<compile_context>
chip_gen: v7x
topology: tpu7x:2x2x1
jax: 0.10.0
libtpu: 0.0.40
codegen_flags: <defaults>
</compile_context>

<pallas_src>
import functools

import jax
import jax.numpy as jnp
from jax.experimental import pallas as pl
from jax.experimental.pallas import tpu as pltpu


def _round_up(v, m):
    return (v + m - 1) // m * m


def _conv_taps_kernel(x_ref, w_ref, b_ref, o_ref, *, taps):
    # x_ref: (C_eff, L_in)        bf16  flattened (padded) input, one batch element
    # w_ref: (n_taps, TCO, C_eff) bf16  per-tap weight slabs (resident across batch axis)
    # b_ref: (TCO, 1)             f32   bias column
    # o_ref: (TCO, L_wide)        f32   lane-dense output block
    l_wide = o_ref.shape[1]
    acc = jnp.zeros(o_ref.shape, jnp.float32)
    for t, off in enumerate(taps):                        # static unroll over the K*K taps
        acc = acc + jnp.dot(w_ref[t], x_ref[:, pl.ds(off, l_wide)],
                            preferred_element_type=jnp.float32)   # MXU, f32 accumulation
    o_ref[...] = jnp.maximum(acc + b_ref[...], 0.0).astype(o_ref.dtype)   # bias + ReLU


def _pick_tile_co(c_out, c_eff, n_taps, l_wide, out_itemsize, budget=12 * 2**20):
    """C_out tile: full if small; else a 128-multiple sized so per-tile blocks fit VMEM."""
    if c_out <= 256:
        return c_out
    per_row = 2 * l_wide * out_itemsize + 2 * n_taps * c_eff * 2 + 2 * 4
    t = max(128, (budget // per_row) // 128 * 128)
    return int(min(t, c_out))


def _tap_gemm(x_flat, w_taps, b_col, taps, l_wide, out_dtype):
    """Y[b] = relu( sum_t w_taps[t] @ x_flat[b, :, taps[t]:taps[t]+l_wide] + b_col )."""
    batch, c_eff, l_in = x_flat.shape
    n_taps, c_out, _ = w_taps.shape
    out_itemsize = jnp.dtype(out_dtype).itemsize

    tile_co = _pick_tile_co(c_out, c_eff, n_taps, l_wide, out_itemsize)
    n_co = pl.cdiv(c_out, tile_co)

    # Real VMEM footprint: 2 pipeline buffers per operand (resident weight included).
    vmem_needed = (2 * c_eff * l_in * x_flat.dtype.itemsize
                   + 2 * n_taps * tile_co * c_eff * w_taps.dtype.itemsize
                   + 2 * tile_co * 4
                   + 2 * tile_co * l_wide * out_itemsize)
    # Floor at the smallest scoped default (v5e, 16 MiB), cap at 48 MiB (fits v7x's 64 MiB).
    vmem_limit = int(min(48 * 2**20, max(16 * 2**20, 2 * vmem_needed)))

    flops = 2 * batch * c_out * c_eff * n_taps * l_wide
    bytes_accessed = (batch * c_eff * l_in * x_flat.dtype.itemsize
                      + n_taps * c_out * c_eff * w_taps.dtype.itemsize
                      + c_out * 4
                      + batch * c_out * l_wide * out_itemsize)

    kernel = functools.partial(_conv_taps_kernel, taps=tuple(taps))

    return pl.pallas_call(
        kernel,
        out_shape=jax.ShapeDtypeStruct((batch, c_out, l_wide), out_dtype),
        grid_spec=pltpu.PrefetchScalarGridSpec(
            num_scalar_prefetch=0,
            grid=(batch, n_co),          # both parallel -> clean split over v7x's 2 TCs
            in_specs=[
                # flattened padded input: batch squeezed, whole (C_eff, L_in) block
                pl.BlockSpec((None, c_eff, l_in), lambda i, j: (i, 0, 0)),
                # per-tap weight slabs (block index constant across the batch axis)
                pl.BlockSpec((n_taps, tile_co, c_eff), lambda i, j: (0, j, 0)),
                # bias column
                pl.BlockSpec((tile_co, 1), lambda i, j: (j, 0)),
            ],
            out_specs=pl.BlockSpec((None, tile_co, l_wide), lambda i, j: (i, j, 0)),
        ),
        compiler_params=pltpu.CompilerParams(
            dimension_semantics=("parallel", "parallel"),
            vmem_limit_bytes=vmem_limit),
        cost_estimate=pl.CostEstimate(
            flops=flops, transcendentals=0, bytes_accessed=bytes_accessed),
    )(x_flat, w_taps, b_col)


def _im2col_strided(xp, k_h, k_w, stride, h_out, w_out):
    """xp: (B, C_in, H_p, W_p) -> (B, C_in*K*K, H_out*W_out); rows ordered (c_in, kh, kw)."""
    b, c_in = xp.shape[0], xp.shape[1]
    taps = []
    for kh in range(k_h):
        for kw in range(k_w):
            taps.append(xp[:, :,
                           kh: kh + (h_out - 1) * stride + 1: stride,
                           kw: kw + (w_out - 1) * stride + 1: stride])
    pat = jnp.stack(taps, axis=2)                       # (B, C_in, K*K, H_out, W_out)
    return pat.reshape(b, c_in * k_h * k_w, h_out * w_out)


def conv2d_block_forward(x, weight, bias, *, stride=1, padding=0):
    """Conv2dBlock forward: ZeroPad2d(padding) -> Conv2d(stride, bias) -> ReLU.

    x: (B, C_in, H, W) f32, weight: (C_out, C_in, K_h, K_w), bias: (C_out,)."""
    b, c_in, h, w = x.shape
    c_out, c_in_w, k_h, k_w = weight.shape
    assert c_in == c_in_w, "weight C_in must match input channels"

    h_p, w_p = h + 2 * padding, w + 2 * padding
    h_out = (h_p - k_h) // stride + 1
    w_out = (w_p - k_w) // stride + 1
    b_col = bias.astype(jnp.float32).reshape(c_out, 1)

    xp = x
    if padding:
        xp = jnp.pad(x, ((0, 0), (0, 0), (padding, padding), (padding, padding)))

    if stride == 1:
        # Fused path: K*K tap extraction happens inside the kernel on the flattened input.
        l_wide = h_out * w_p                               # wide output (junk right columns)
        l_in = _round_up(h_p * w_p + (k_w - 1), 128)       # room for the wrap-around taps
        x_flat = xp.reshape(b, c_in, h_p * w_p)
        x_flat = jnp.pad(x_flat, ((0, 0), (0, 0), (0, l_in - h_p * w_p)))
        x_flat = x_flat.astype(jnp.bfloat16)               # bf16 stream, f32 accumulation
        w_taps = jnp.transpose(weight, (2, 3, 0, 1)).reshape(
            k_h * k_w, c_out, c_in).astype(jnp.bfloat16)   # (K*K, C_out, C_in)
        taps = [kh * w_p + kw for kh in range(k_h) for kw in range(k_w)]
        out = _tap_gemm(x_flat, w_taps, b_col, taps, l_wide, x.dtype)
        # (B, C_out, H_out*W_p) -> drop the K-1 junk columns per output row.
        return out.reshape(b, c_out, h_out, w_p)[:, :, :, :w_out]

    # stride > 1 fallback: wrapper-side strided im2col feeding the same GEMM kernel.
    patches = _im2col_strided(xp, k_h, k_w, stride, h_out, w_out).astype(jnp.bfloat16)
    w_taps = weight.reshape(1, c_out, c_in * k_h * k_w).astype(jnp.bfloat16)
    out = _tap_gemm(patches, w_taps, b_col, [0], h_out * w_out, x.dtype)
    return out.reshape(b, c_out, h_out, w_out)


if __name__ == "__main__":
    key = jax.random.PRNGKey(0)
    k_x, k_w, k_b = jax.random.split(key, 3)

    # Small shapes consistent with the module defaults (zero pad, norm='none', relu).
    B, C_IN, C_OUT, H, W = 2, 4, 8, 16, 16
    K, S, P = 3, 1, 1

    x = jax.random.normal(k_x, (B, C_IN, H, W), dtype=jnp.float32)

    # Deterministic nn.Conv2d-style init: U(-1/sqrt(fan_in), 1/sqrt(fan_in)).
    fan_in = C_IN * K * K
    bound = 1.0 / jnp.sqrt(jnp.float32(fan_in))
    weight = jax.random.uniform(k_w, (C_OUT, C_IN, K, K), jnp.float32, -bound, bound)
    bias = jax.random.uniform(k_b, (C_OUT,), jnp.float32, -bound, bound)

    out = conv2d_block_forward(x, weight, bias, stride=S, padding=P)
    out = jax.block_until_ready(out)

    # Reference with matching operand precision (bf16-rounded inputs, f32 accumulation).
    x_r = x.astype(jnp.bfloat16).astype(jnp.float32)
    w_r = weight.astype(jnp.bfloat16).astype(jnp.float32)
    ref = jax.lax.conv_general_dilated(
        x_r, w_r, window_strides=(S, S), padding=((P, P), (P, P)),
        dimension_numbers=("NCHW", "OIHW", "NCHW"),
        precision=jax.lax.Precision.HIGHEST)
    ref = jnp.maximum(ref + bias.reshape(1, C_OUT, 1, 1), 0.0)

    assert out.shape == ref.shape, (out.shape, ref.shape)
    max_err = float(jnp.max(jnp.abs(out - ref)))
    assert jnp.allclose(out, ref, atol=2e-4, rtol=2e-4), (
        "mismatch vs reference, max abs err = %e" % max_err)

    print("KERNEL_OK")
</pallas_src>

<mosaic_0001>
module attributes {stable_mosaic.version = 11 : i64} {
  func.func @_conv_taps_kernel(%arg0: i32, %arg1: i32, %arg2: memref<1x4x384xbf16, #tpu.memory_space<vmem>>, %arg3: memref<9x8x4xbf16, #tpu.memory_space<vmem>>, %arg4: memref<8x1xf32, #tpu.memory_space<vmem>>, %arg5: memref<1x8x288xf32, #tpu.memory_space<vmem>>) attributes {dimension_semantics = [#tpu.dimension_semantics<parallel>, #tpu.dimension_semantics<parallel>], iteration_bounds = array<i64: 2, 1>, scalar_prefetch = 0 : i64, scratch_operands = 0 : i64, tpu.core_type = #tpu.core_type<tc>, window_params = [{transform_indices = @transform_0, window_bounds = array<i64: 1, 4, 384>}, {transform_indices = @transform_1, window_bounds = array<i64: 9, 8, 4>}, {transform_indices = @transform_2, window_bounds = array<i64: 8, 1>}, {transform_indices = @transform_3, window_bounds = array<i64: 1, 8, 288>}]} {
    %cst = arith.constant 0.000000e+00 : f32
    %0 = vector.broadcast %cst : f32 to vector<8x288xf32>
    %c0 = arith.constant 0 : index
    %c0_0 = arith.constant 0 : index
    %c0_1 = arith.constant 0 : index
    %1 = vector.load %arg3[%c0, %c0_0, %c0_1] : memref<9x8x4xbf16, #tpu.memory_space<vmem>>, vector<1x8x4xbf16>
    %2 = vector.shape_cast %1 : vector<1x8x4xbf16> to vector<8x4xbf16>
    %c0_2 = arith.constant 0 : index
    %c0_3 = arith.constant 0 : index
    %c0_4 = arith.constant 0 : index
    %3 = vector.load %arg2[%c0_2, %c0_3, %c0_4] : memref<1x4x384xbf16, #tpu.memory_space<vmem>>, vector<1x4x288xbf16>
    %4 = vector.shape_cast %3 : vector<1x4x288xbf16> to vector<4x288xbf16>
    %cst_5 = arith.constant dense<0.000000e+00> : vector<8x288xf32>
    %5 = tpu.matmul %2, %4, %cst_5 {dimension_numbers = #tpu.dot_dimension_numbers<[1], [0], [0], [1], [0, 0, 1, 1], [], []>} : vector<8x4xbf16>, vector<4x288xbf16>, vector<8x288xf32> -> vector<8x288xf32>
    %6 = arith.addf %0, %5 : vector<8x288xf32>
    %c1 = arith.constant 1 : index
    %c0_6 = arith.constant 0 : index
    %c0_7 = arith.constant 0 : index
    %7 = vector.load %arg3[%c1, %c0_6, %c0_7] : memref<9x8x4xbf16, #tpu.memory_space<vmem>>, vector<1x8x4xbf16>
    %8 = vector.shape_cast %7 : vector<1x8x4xbf16> to vector<8x4xbf16>
    %c0_8 = arith.constant 0 : index
    %c0_9 = arith.constant 0 : index
    %c1_10 = arith.constant 1 : index
    %9 = vector.load %arg2[%c0_8, %c0_9, %c1_10] : memref<1x4x384xbf16, #tpu.memory_space<vmem>>, vector<1x4x288xbf16>
    %10 = vector.shape_cast %9 : vector<1x4x288xbf16> to vector<4x288xbf16>
    %cst_11 = arith.constant dense<0.000000e+00> : vector<8x288xf32>
    %11 = tpu.matmul %8, %10, %cst_11 {dimension_numbers = #tpu.dot_dimension_numbers<[1], [0], [0], [1], [0, 0, 1, 1], [], []>} : vector<8x4xbf16>, vector<4x288xbf16>, vector<8x288xf32> -> vector<8x288xf32>
    %12 = arith.addf %6, %11 : vector<8x288xf32>
    %c2 = arith.constant 2 : index
    %c0_12 = arith.constant 0 : index
    %c0_13 = arith.constant 0 : index
    %13 = vector.load %arg3[%c2, %c0_12, %c0_13] : memref<9x8x4xbf16, #tpu.memory_space<vmem>>, vector<1x8x4xbf16>
    %14 = vector.shape_cast %13 : vector<1x8x4xbf16> to vector<8x4xbf16>
    %c0_14 = arith.constant 0 : index
    %c0_15 = arith.constant 0 : index
    %c2_16 = arith.constant 2 : index
    %15 = vector.load %arg2[%c0_14, %c0_15, %c2_16] : memref<1x4x384xbf16, #tpu.memory_space<vmem>>, vector<1x4x288xbf16>
    %16 = vector.shape_cast %15 : vector<1x4x288xbf16> to vector<4x288xbf16>
    %cst_17 = arith.constant dense<0.000000e+00> : vector<8x288xf32>
    %17 = tpu.matmul %14, %16, %cst_17 {dimension_numbers = #tpu.dot_dimension_numbers<[1], [0], [0], [1], [0, 0, 1, 1], [], []>} : vector<8x4xbf16>, vector<4x288xbf16>, vector<8x288xf32> -> vector<8x288xf32>
    %18 = arith.addf %12, %17 : vector<8x288xf32>
    %c3 = arith.constant 3 : index
    %c0_18 = arith.constant 0 : index
    %c0_19 = arith.constant 0 : index
    %19 = vector.load %arg3[%c3, %c0_18, %c0_19] : memref<9x8x4xbf16, #tpu.memory_space<vmem>>, vector<1x8x4xbf16>
    %20 = vector.shape_cast %19 : vector<1x8x4xbf16> to vector<8x4xbf16>
    %c0_20 = arith.constant 0 : index
    %c0_21 = arith.constant 0 : index
    %c18 = arith.constant 18 : index
    %21 = vector.load %arg2[%c0_20, %c0_21, %c18] : memref<1x4x384xbf16, #tpu.memory_space<vmem>>, vector<1x4x288xbf16>
    %22 = vector.shape_cast %21 : vector<1x4x288xbf16> to vector<4x288xbf16>
    %cst_22 = arith.constant dense<0.000000e+00> : vector<8x288xf32>
    %23 = tpu.matmul %20, %22, %cst_22 {dimension_numbers = #tpu.dot_dimension_numbers<[1], [0], [0], [1], [0, 0, 1, 1], [], []>} : vector<8x4xbf16>, vector<4x288xbf16>, vector<8x288xf32> -> vector<8x288xf32>
    %24 = arith.addf %18, %23 : vector<8x288xf32>
    %c4 = arith.constant 4 : index
    %c0_23 = arith.constant 0 : index
    %c0_24 = arith.constant 0 : index
    %25 = vector.load %arg3[%c4, %c0_23, %c0_24] : memref<9x8x4xbf16, #tpu.memory_space<vmem>>, vector<1x8x4xbf16>
    %26 = vector.shape_cast %25 : vector<1x8x4xbf16> to vector<8x4xbf16>
    %c0_25 = arith.constant 0 : index
    %c0_26 = arith.constant 0 : index
    %c19 = arith.constant 19 : index
    %27 = vector.load %arg2[%c0_25, %c0_26, %c19] : memref<1x4x384xbf16, #tpu.memory_space<vmem>>, vector<1x4x288xbf16>
    %28 = vector.shape_cast %27 : vector<1x4x288xbf16> to vector<4x288xbf16>
    %cst_27 = arith.constant dense<0.000000e+00> : vector<8x288xf32>
    %29 = tpu.matmul %26, %28, %cst_27 {dimension_numbers = #tpu.dot_dimension_numbers<[1], [0], [0], [1], [0, 0, 1, 1], [], []>} : vector<8x4xbf16>, vector<4x288xbf16>, vector<8x288xf32> -> vector<8x288xf32>
    %30 = arith.addf %24, %29 : vector<8x288xf32>
    %c5 = arith.constant 5 : index
    %c0_28 = arith.constant 0 : index
    %c0_29 = arith.constant 0 : index
    %31 = vector.load %arg3[%c5, %c0_28, %c0_29] : memref<9x8x4xbf16, #tpu.memory_space<vmem>>, vector<1x8x4xbf16>
    %32 = vector.shape_cast %31 : vector<1x8x4xbf16> to vector<8x4xbf16>
    %c0_30 = arith.constant 0 : index
    %c0_31 = arith.constant 0 : index
    %c20 = arith.constant 20 : index
    %33 = vector.load %arg2[%c0_30, %c0_31, %c20] : memref<1x4x384xbf16, #tpu.memory_space<vmem>>, vector<1x4x288xbf16>
    %34 = vector.shape_cast %33 : vector<1x4x288xbf16> to vector<4x288xbf16>
    %cst_32 = arith.constant dense<0.000000e+00> : vector<8x288xf32>
    %35 = tpu.matmul %32, %34, %cst_32 {dimension_numbers = #tpu.dot_dimension_numbers<[1], [0], [0], [1], [0, 0, 1, 1], [], []>} : vector<8x4xbf16>, vector<4x288xbf16>, vector<8x288xf32> -> vector<8x288xf32>
    %36 = arith.addf %30, %35 : vector<8x288xf32>
    %c6 = arith.constant 6 : index
    %c0_33 = arith.constant 0 : index
    %c0_34 = arith.constant 0 : index
    %37 = vector.load %arg3[%c6, %c0_33, %c0_34] : memref<9x8x4xbf16, #tpu.memory_space<vmem>>, vector<1x8x4xbf16>
    %38 = vector.shape_cast %37 : vector<1x8x4xbf16> to vector<8x4xbf16>
    %c0_35 = arith.constant 0 : index
    %c0_36 = arith.constant 0 : index
    %c36 = arith.constant 36 : index
    %39 = vector.load %arg2[%c0_35, %c0_36, %c36] : memref<1x4x384xbf16, #tpu.memory_space<vmem>>, vector<1x4x288xbf16>
    %40 = vector.shape_cast %39 : vector<1x4x288xbf16> to vector<4x288xbf16>
    %cst_37 = arith.constant dense<0.000000e+00> : vector<8x288xf32>
    %41 = tpu.matmul %38, %40, %cst_37 {dimension_numbers = #tpu.dot_dimension_numbers<[1], [0], [0], [1], [0, 0, 1, 1], [], []>} : vector<8x4xbf16>, vector<4x288xbf16>, vector<8x288xf32> -> vector<8x288xf32>
    %42 = arith.addf %36, %41 : vector<8x288xf32>
    %c7 = arith.constant 7 : index
    %c0_38 = arith.constant 0 : index
    %c0_39 = arith.constant 0 : index
    %43 = vector.load %arg3[%c7, %c0_38, %c0_39] : memref<9x8x4xbf16, #tpu.memory_space<vmem>>, vector<1x8x4xbf16>
    %44 = vector.shape_cast %43 : vector<1x8x4xbf16> to vector<8x4xbf16>
    %c0_40 = arith.constant 0 : index
    %c0_41 = arith.constant 0 : index
    %c37 = arith.constant 37 : index
    %45 = vector.load %arg2[%c0_40, %c0_41, %c37] : memref<1x4x384xbf16, #tpu.memory_space<vmem>>, vector<1x4x288xbf16>
    %46 = vector.shape_cast %45 : vector<1x4x288xbf16> to vector<4x288xbf16>
    %cst_42 = arith.constant dense<0.000000e+00> : vector<8x288xf32>
    %47 = tpu.matmul %44, %46, %cst_42 {dimension_numbers = #tpu.dot_dimension_numbers<[1], [0], [0], [1], [0, 0, 1, 1], [], []>} : vector<8x4xbf16>, vector<4x288xbf16>, vector<8x288xf32> -> vector<8x288xf32>
    %48 = arith.addf %42, %47 : vector<8x288xf32>
    %c8 = arith.constant 8 : index
    %c0_43 = arith.constant 0 : index
    %c0_44 = arith.constant 0 : index
    %49 = vector.load %arg3[%c8, %c0_43, %c0_44] : memref<9x8x4xbf16, #tpu.memory_space<vmem>>, vector<1x8x4xbf16>
    %50 = vector.shape_cast %49 : vector<1x8x4xbf16> to vector<8x4xbf16>
    %c0_45 = arith.constant 0 : index
    %c0_46 = arith.constant 0 : index
    %c38 = arith.constant 38 : index
    %51 = vector.load %arg2[%c0_45, %c0_46, %c38] : memref<1x4x384xbf16, #tpu.memory_space<vmem>>, vector<1x4x288xbf16>
    %52 = vector.shape_cast %51 : vector<1x4x288xbf16> to vector<4x288xbf16>
    %cst_47 = arith.constant dense<0.000000e+00> : vector<8x288xf32>
    %53 = tpu.matmul %50, %52, %cst_47 {dimension_numbers = #tpu.dot_dimension_numbers<[1], [0], [0], [1], [0, 0, 1, 1], [], []>} : vector<8x4xbf16>, vector<4x288xbf16>, vector<8x288xf32> -> vector<8x288xf32>
    %54 = arith.addf %48, %53 : vector<8x288xf32>
    %c0_48 = arith.constant 0 : index
    %c0_49 = arith.constant 0 : index
    %55 = vector.load %arg4[%c0_48, %c0_49] : memref<8x1xf32, #tpu.memory_space<vmem>>, vector<8x1xf32>
    %56 = vector.broadcast %55 : vector<8x1xf32> to vector<8x288xf32>
    %57 = arith.addf %54, %56 : vector<8x288xf32>
    %cst_50 = arith.constant 0.000000e+00 : f32
    %58 = vector.broadcast %cst_50 : f32 to vector<8x288xf32>
    %59 = arith.maximumf %57, %58 : vector<8x288xf32>
    %c0_51 = arith.constant 0 : index
    %c0_52 = arith.constant 0 : index
    %c0_53 = arith.constant 0 : index
    %60 = vector.load %arg5[%c0_51, %c0_52, %c0_53] : memref<1x8x288xf32, #tpu.memory_space<vmem>>, vector<1x8x288xf32>
    %61 = vector.shape_cast %60 : vector<1x8x288xf32> to vector<8x288xf32>
    %62 = vector.shape_cast %59 : vector<8x288xf32> to vector<1x8x288xf32>
    tpu.vector_store %arg5[%c0_51, %c0_52, %c0_53], %62 {strides = array<i32>} : memref<1x8x288xf32, #tpu.memory_space<vmem>>, vector<1x8x288xf32>,
    return
  }
  func.func @transform_0(%arg0: i32, %arg1: i32) -> (i32, i32, i32) {
    %c0_i32 = arith.constant 0 : i32
    %c0_i32_0 = arith.constant 0 : i32
    %c0_i32_1 = arith.constant 0 : i32
    return %arg0, %c0_i32, %c0_i32_0 : i32, i32, i32
  }
  func.func @transform_1(%arg0: i32, %arg1: i32) -> (i32, i32, i32) {
    %c0_i32 = arith.constant 0 : i32
    %c0_i32_0 = arith.constant 0 : i32
    %c0_i32_1 = arith.constant 0 : i32
    return %c0_i32, %arg1, %c0_i32_0 : i32, i32, i32
  }
  func.func @transform_2(%arg0: i32, %arg1: i32) -> (i32, i32) {
    %c0_i32 = arith.constant 0 : i32
    %c0_i32_0 = arith.constant 0 : i32
    return %arg1, %c0_i32 : i32, i32
  }
  func.func @transform_3(%arg0: i32, %arg1: i32) -> (i32, i32, i32) {
    %c0_i32 = arith.constant 0 : i32
    %c0_i32_0 = arith.constant 0 : i32
    return %arg0, %arg1, %c0_i32 : i32, i32, i32
  }
}

</mosaic_0001>

<llo_original>
// kernel: tpu_custom_call.1
$region0: #{tpu_custom_call.1}
  #allocation0 [shape = 'u32[]', space=smem, size = 0x4, offset = 0x4, fixed_abs, tag = 'smem constant byte address 0x4 - core index']
  #allocation1 [shape = 'u32[144,128]{1,0:T(1,128)}', space=vmem, size = 0x12000, scoped, tag = 'internal scratch']
  %s0 = inlined_call_operand.vmem [shape: bf16[2,4,384], index: 0, kind: input, shape index: {}]
  %s1 = inlined_call_operand.vmem [shape: bf16[9,8,4], index: 1, kind: input, shape index: {}]
  %s2 = inlined_call_operand.vmem [shape: f32[8,1], index: 2, kind: input, shape index: {}]
  %s3 = inlined_call_operand.hbm [shape: f32[2,8,288], index: 3, kind: output, shape index: {}]
  %s4 = sld [smem:[#allocation0]]
  $region45: #{tpu_custom_call.1} parent=0
    _
  %s6 = ssub.s32 1, %s4
  %s7 = scalar_select 0, %s6, %s4
  $region1: #{tpu_custom_call.1} parent=0
    #allocation2 [shape = 'u8[24576]{0}', space=vmem, size = 0x6000, scoped, tag = 'output window, operand 0']
    #allocation3 [shape = 's32[2]{0}', space=sflag, size = 0x8, scoped, tag = 'scoped memory for tpu_custom_call.1']
    %8 = vsyncpa [#allocation3], 0
    %s9 = scalar_lea.sflag [#allocation3], 1
    %10 = vsyncpa %s9, 0
    loop: start=0, step=1, limit=4
    $region2: #{tpu_custom_call.1} parent=1 // loop_pre_header
      _
    $region3: #{tpu_custom_call.1} parent=1 // loop_header
      %s12 = sphi 0, %s16
      %p13 = scmp.ge.s32.totalorder %s12, 4
      %s19 = sphi 0, %s31
      %s20 = sphi 0, %s27
      %s21 = sphi 0, %s19
      %s22 = sphi 0, %s20
      %s23 = sphi 0, %s21
      %s24 = sphi 0, %s22
      %s34 = sphi 0, %s36
      %s37 = sphi 0, %s34
      %s38 = sphi 0, %s37
      %s54 = sphi 0, %s38
      %s60 = sphi 0, %s62
      %s63 = sphi 0, %s60
      %s64 = sphi 0, %s63
      %s80 = sphi 0, %s64
      %s86 = sphi 0, %s88
      %s89 = sphi 0, %s86
      %s90 = sphi 0, %s89
      %s106 = sphi 0, %s90
      %s114 = sphi 0, %s116
      %s117 = sphi 0, %s114
      %s118 = sphi 0, %s117
      %s134 = sphi 0, %s118
    $region4: #{tpu_custom_call.1} parent=1 // loop_header_branch
      %15 = sbr.rel (%p13) target = $region8
    $region5: #{tpu_custom_call.1} parent=1 // loop_body
      %s17 = ssub.s32 %s12, 1
      %s18 = ssub.s32 %s12, 2
      %s25 = sadd.s32 1, %s20
      %p26 = scmp.ge.s32.totalorder %s25, 1
      %s27 = scalar_select %p26, 0, %s25
      %s28 = sadd.s32 1, %s19
      %s29 = scalar_select %p26, %s28, %s19
      %p30 = scmp.ge.s32.totalorder %s29, 2
      %s31 = scalar_select %p30, 0, %s29
      %s32 = ssub.s32 %s19, %s31
      %p33 = scmp.eq.s32.totalorder %s32, 0
      %s35 = sadd.s32 %s34, 1
      %s36 = scalar_select %p33, %s34, %s35
      %p39 = pneg %p33
      %p40 = scmp.eq.s32.totalorder %s12, 1
      %p41 = por %p39, %p40
      %p42 = scmp.ne.s32.totalorder %s34, %s37
      %p43 = scmp.eq.s32.totalorder %s12, 0
      %p44 = por %p42, %p43
      %p45 = scmp.ne.s32.totalorder %s34, %s37
      %p46 = scmp.eq.s32.totalorder %s17, 1
      %p47 = por %p45, %p46
      %p48 = scmp.ne.s32.totalorder %s37, %s38
      %p49 = scmp.eq.s32.totalorder %s17, 0
      %p50 = por %p48, %p49
      %p51 = scmp.ne.s32.totalorder %s37, %s38
      %p52 = scmp.eq.s32.totalorder %s18, 1
      %p53 = por %p51, %p52
      %p55 = scmp.ne.s32.totalorder %s38, %s54
      %p56 = scmp.eq.s32.totalorder %s18, 0
      %p57 = por %p55, %p56
      %s58 = ssub.s32 %s20, %s27
      %p59 = scmp.eq.s32.totalorder %s58, 0
      %s61 = sadd.s32 %s60, 1
      %s62 = scalar_select %p59, %s60, %s61
      %p65 = pneg %p59
      %p66 = scmp.eq.s32.totalorder %s12, 1
      %p67 = por %p65, %p66
      %p68 = scmp.ne.s32.totalorder %s60, %s63
      %p69 = scmp.eq.s32.totalorder %s12, 0
      %p70 = por %p68, %p69
      %p71 = scmp.ne.s32.totalorder %s60, %s63
      %p72 = scmp.eq.s32.totalorder %s17, 1
      %p73 = por %p71, %p72
      %p74 = scmp.ne.s32.totalorder %s63, %s64
      %p75 = scmp.eq.s32.totalorder %s17, 0
      %p76 = por %p74, %p75
      %p77 = scmp.ne.s32.totalorder %s63, %s64
      %p78 = scmp.eq.s32.totalorder %s18, 1
      %p79 = por %p77, %p78
      %p81 = scmp.ne.s32.totalorder %s64, %s80
      %p82 = scmp.eq.s32.totalorder %s18, 0
      %p83 = por %p81, %p82
      %s84 = ssub.s32 %s20, %s27
      %p85 = scmp.eq.s32.totalorder %s84, 0
      %s87 = sadd.s32 %s86, 1
      %s88 = scalar_select %p85, %s86, %s87
      %p91 = pneg %p85
      %p92 = scmp.eq.s32.totalorder %s12, 1
      %p93 = por %p91, %p92
      %p94 = scmp.ne.s32.totalorder %s86, %s89
      %p95 = scmp.eq.s32.totalorder %s12, 0
      %p96 = por %p94, %p95
      %p97 = scmp.ne.s32.totalorder %s86, %s89
      %p98 = scmp.eq.s32.totalorder %s17, 1
      %p99 = por %p97, %p98
      %p100 = scmp.ne.s32.totalorder %s89, %s90
      %p101 = scmp.eq.s32.totalorder %s17, 0
      %p102 = por %p100, %p101
      %p103 = scmp.ne.s32.totalorder %s89, %s90
      %p104 = scmp.eq.s32.totalorder %s18, 1
      %p105 = por %p103, %p104
      %p107 = scmp.ne.s32.totalorder %s90, %s106
      %p108 = scmp.eq.s32.totalorder %s18, 0
      %p109 = por %p107, %p108
      %s110 = ssub.s32 %s19, %s31
      %s111 = ssub.s32 %s20, %s27
      %s112 = sor.u32 %s110, %s111
      %p113 = scmp.eq.s32.totalorder %s112, 0
      %s115 = sadd.s32 %s114, 1
      %s116 = scalar_select %p113, %s114, %s115
      %p119 = pneg %p113
      %p120 = scmp.eq.s32.totalorder %s12, 1
      %p121 = por %p119, %p120
      %p122 = scmp.ne.s32.totalorder %s114, %s117
      %p123 = scmp.eq.s32.totalorder %s12, 0
      %p124 = por %p122, %p123
      %p125 = scmp.ne.s32.totalorder %s114, %s117
      %p126 = scmp.eq.s32.totalorder %s17, 1
      %p127 = por %p125, %p126
      %p128 = scmp.ne.s32.totalorder %s117, %s118
      %p129 = scmp.eq.s32.totalorder %s17, 0
      %p130 = por %p128, %p129
      %p131 = scmp.ne.s32.totalorder %s117, %s118
      %p132 = scmp.eq.s32.totalorder %s18, 1
      %p133 = por %p131, %p132
      %p135 = scmp.ne.s32.totalorder %s118, %s134
      %p136 = scmp.eq.s32.totalorder %s18, 0
      %p137 = por %p135, %p136
      %p138 = scmp.le.s32.totalorder 1, %s12
      %p139 = scmp.lt.s32.totalorder %s12, 3
      %p140 = pnand %p138, %p139
      %p141 = pneg %p140
      // Predicated region
      $region9: #{tpu_custom_call.1} parent=5 // pred_check
        _
      $region10: #{tpu_custom_call.1} parent=5 // pred_check_branch
        %143 = sbr.rel (%p140) target = $region12
      $region11: #{tpu_custom_call.1} parent=5 // pred_region
        %s144 = ssub.s32 %s12, 1
        // Predicated region
        $region13: #{tpu_custom_call.1} parent=11 // pred_check
          %p145 = pneg %p76
        $region14: #{tpu_custom_call.1} parent=11 // pred_check_branch
          %147 = sbr.rel (%p145) target = $region16
        $region15: #{tpu_custom_call.1} parent=11 // pred_region
          %p148 = scmp.lt.s32.totalorder %s22, 0
          %s149 = scalar_select %p148, %s22, 0
          %s150 = smul.addr %s149, 4
          %s151 = scalar_lea.vmem %s1, %s150
        $region16: #{tpu_custom_call.1} parent=11 // pred_fallthru
          _
        // Predicated region
        $region17: #{tpu_custom_call.1} parent=11 // pred_check
          %p152 = pneg %p102
        $region18: #{tpu_custom_call.1} parent=11 // pred_check_branch
          %154 = sbr.rel (%p152) target = $region20
        $region19: #{tpu_custom_call.1} parent=11 // pred_region
          %p155 = scmp.lt.s32.totalorder %s22, 0
          %s156 = scalar_select %p155, %s22, 0
          %s157 = smul.addr %s156, 8
          %s158 = scalar_lea.vmem %s2, %s157
        $region20: #{tpu_custom_call.1} parent=11 // pred_fallthru
          _
      $region12: #{tpu_custom_call.1} parent=5 // pred_fallthru
        _
      %p159 = scmp.lt.s32.totalorder %s12, 2
      // Predicated region
      $region21: #{tpu_custom_call.1} parent=5 // pred_check
        %p160 = pneg %p159
      $region22: #{tpu_custom_call.1} parent=5 // pred_check_branch
        %162 = sbr.rel (%p160) target = $region24
      $region23: #{tpu_custom_call.1} parent=5 // pred_region
        // Predicated region
        $region25: #{tpu_custom_call.1} parent=23 // pred_check
          %p163 = pneg %p44
        $region26: #{tpu_custom_call.1} parent=23 // pred_check_branch
          %165 = sbr.rel (%p163) target = $region28
        $region27: #{tpu_custom_call.1} parent=23 // pred_region
          %p166 = scmp.lt.s32.totalorder %s19, 1
          %s167 = scalar_select %p166, %s19, 1
          %s168 = smul.addr %s167, 3
          %s169 = smul.addr %s168, 2
          %s170 = scalar_lea.vmem %s0, %s169
        $region28: #{tpu_custom_call.1} parent=23 // pred_fallthru
          _
      $region24: #{tpu_custom_call.1} parent=5 // pred_fallthru
        _
      %p171 = scmp.le.s32.totalorder 1, %s12
      %p172 = scmp.lt.s32.totalorder %s12, 3
      %p173 = pnand %p171, %p172
      %p174 = pneg %p173
      // Predicated region
      $region29: #{tpu_custom_call.1} parent=5 // pred_check
        _
      $region30: #{tpu_custom_call.1} parent=5 // pred_check_branch
        %176 = sbr.rel (%p173) target = $region32
      $region31: #{tpu_custom_call.1} parent=5 // pred_region
        %s177 = ssub.s32 %s12, 1
        %p178 = scmp.lt.s32.totalorder %s21, 1
        %s179 = scalar_select %p178, %s21, 1
        %s180 = smul.addr %s179, 3
        %s181 = smul.addr %s180, 2
        %s182 = scalar_lea.vmem %s0, %s181
        %p183 = pneg %p50
        %p184 = pneg %p47
        %p185 = scmp.lt.s32.totalorder %s22, 0
        %s186 = scalar_select %p185, %s22, 0
        %s187 = smul.addr %s186, 4
        %s188 = scalar_lea.vmem %s1, %s187
        %p189 = pneg %p76
        %p190 = pneg %p73
        %p191 = scmp.lt.s32.totalorder %s22, 0
        %s192 = scalar_select %p191, %s22, 0
        %s193 = smul.addr %s192, 8
        %s194 = scalar_lea.vmem %s2, %s193
        %p195 = pneg %p102
        %p196 = pneg %p99
        %p197 = pneg %p130
        %p198 = pneg %p127
        %s199 = sand.u32 %s117, 1
        %s200 = scalar_lea.sflag [#allocation3], %s199
        %s201 = sand.u32 %s117, 1
        %s202 = smul.addr %s201, 24
        %s203 = scalar_lea.vmem [#allocation2], %s202
        %p204 = scmp.lt.s32.totalorder %s21, 1
        %s205 = scalar_select %p204, %s21, 1
        %s206 = smul.addr %s205, 3
        %s207 = smul.addr %s206, 2
        %s208 = scalar_lea.vmem %s0, %s207
        %p209 = scmp.lt.s32.totalorder %s22, 0
        %s210 = scalar_select %p209, %s22, 0
        %s211 = smul.addr %s210, 4
        %s212 = scalar_lea.vmem %s1, %s211
        %p213 = scmp.lt.s32.totalorder %s22, 0
        %s214 = scalar_select %p213, %s22, 0
        %s215 = smul.addr %s214, 8
        %s216 = scalar_lea.vmem %s2, %s215
        %v218 = vld [vmem:[%s212] sm:$0xf]
        %v219 = vld [vmem:[%s208] sm:$0x3f]
        %s220 = scalar_lea.vmem %s212, 4
        %v221 = vld [vmem:[%s220] sm:$0xf]
        %v223 = vcombine.high %v219, %v219
        %v225 = vunpack.c.l.s4 1983009808
        %v226 = vunpack.c.0.s8 %v225
        %v227 = vlaneseq
        %v228 = vshrl.u32 %v227, 7
        %v229 = vsub.s32 %v226, %v228
        %v230 = vrot.slane %v219, %v229
        %v232 = vunpack.c.l.s4 1983009808
        %v233 = vunpack.c.0.s8 %v232
        %v234 = vlaneseq
        %v235 = vshrl.u32 %v234, 7
        %v236 = vsub.s32 %v233, %v235
        %v237 = vrot.slane %v223, %v236
        %v238 = vcombine.high %v230, %v230
        %239 = vrot.lane.b32.xlu0 %v230, 127
        %v240 = vpop.permute.xlu0 %239
        %241 = vrot.lane.b32.xlu0 %v238, 127
        %v242 = vpop.permute.xlu0 %241
        %243 = vrot.lane.b32.xlu0 %v237, 127
        %v244 = vpop.permute.xlu0 %243
        %vm245 = vcmask 1039360
        %v246 = vsel %vm245, %v240, %v242
        %v247 = vsel %vm245, %v242, %v244
        %vm248 = vcmask 31744
        %v250 = vsel %vm248, %v221, 0
        %vm252 = vcmask 1041408
        %v254 = vsel %vm252, %v246, 0
        %v257 = vsel %vm252, %v247, 0
        %v260 = vsel %vm252, %v244, 0
        %262 = vmatprep.subr.bf16.mxu0 %v257
        %263 = vmatpush1.bf16.msra.mxu0 %v254
        %264 = vmatprep.subr.bf16.mxu0 0
        %265 = vmatpush1.bf16.msra.mxu0 0
        %266 = vmatprep.subr.bf16.mxu0 0
        %267 = vmatpush1.bf16.msra.mxu0 0
        %268 = vmatprep.subr.bf16.mxu0 0
        %269 = vmatpush1.bf16.msra.mxu0 0
        %270 = vmatprep.subr.bf16.mxu0 0
        %271 = vmatpush1.bf16.msra.mxu0 0
        %272 = vmatprep.subr.bf16.mxu0 0
        %273 = vmatpush1.bf16.msra.mxu0 0
        %274 = vmatprep.subr.bf16.mxu0 0
        %275 = vmatpush1.bf16.msra.mxu0 0
        %276 = vmatprep.subr.bf16.mxu0 0
        %277 = vmatpush1.bf16.msra.mxu0 0
        %278 = vmatprep.subr.bf16.mxu0 0
        %279 = vmatpush1.bf16.msra.mxu0 0
        %280 = vmatprep.subr.bf16.mxu0 0
        %281 = vmatpush1.bf16.msra.mxu0 0
        %282 = vmatprep.subr.bf16.mxu0 0
        %283 = vmatpush1.bf16.msra.mxu0 0
        %284 = vmatprep.subr.bf16.mxu0 0
        %285 = vmatpush1.bf16.msra.mxu0 0
        %286 = vmatprep.subr.bf16.mxu0 0
        %287 = vmatpush1.bf16.msra.mxu0 0
        %288 = vmatprep.subr.bf16.mxu0 0
        %289 = vmatpush1.bf16.msra.mxu0 0
        %290 = vmatprep.subr.bf16.mxu0 0
        %291 = vmatpush1.bf16.msra.mxu0 0
        %292 = vmatprep.subr.bf16.mxu0 0
        %293 = vmatpush1.bf16.msra.mxu0 0
        %294 = vmatprep.mubr.bf16.mxu0 0
        %295 = vmatmul.mubr.bf16.gmra.mrb[0].mxu0 %v250
        %v296 = vpop.f32.mrb[0].mxu0
        %v297 = vadd.f32 0.0, %v296
        %v298 = vpop.f32.mrb[0].mxu0
        %v299 = vadd.f32 0.0, %v298
        %v300 = vpop.f32.mrb[0].mxu0
        %v301 = vpop.f32.mrb[0].mxu0
        %302 = vdwg.mxu0
        %303 = vmatprep.subr.bf16.mxu0 0
        %304 = vmatpush1.bf16.msra.mxu0 %v260
        %305 = vmatprep.subr.bf16.mxu0 0
        %306 = vmatpush1.bf16.msra.mxu0 0
        %307 = vmatprep.subr.bf16.mxu0 0
        %308 = vmatpush1.bf16.msra.mxu0 0
        %309 = vmatprep.subr.bf16.mxu0 0
        %310 = vmatpush1.bf16.msra.mxu0 0
        %311 = vmatprep.subr.bf16.mxu0 0
        %312 = vmatpush1.bf16.msra.mxu0 0
        %313 = vmatprep.subr.bf16.mxu0 0
        %314 = vmatpush1.bf16.msra.mxu0 0
        %315 = vmatprep.subr.bf16.mxu0 0
        %316 = vmatpush1.bf16.msra.mxu0 0
        %317 = vmatprep.subr.bf16.mxu0 0
        %318 = vmatpush1.bf16.msra.mxu0 0
        %319 = vmatprep.subr.bf16.mxu0 0
        %320 = vmatpush1.bf16.msra.mxu0 0
        %321 = vmatprep.subr.bf16.mxu0 0
        %322 = vmatpush1.bf16.msra.mxu0 0
        %323 = vmatprep.subr.bf16.mxu0 0
        %324 = vmatpush1.bf16.msra.mxu0 0
        %325 = vmatprep.subr.bf16.mxu0 0
        %326 = vmatpush1.bf16.msra.mxu0 0
        %327 = vmatprep.subr.bf16.mxu0 0
        %328 = vmatpush1.bf16.msra.mxu0 0
        %329 = vmatprep.subr.bf16.mxu0 0
        %330 = vmatpush1.bf16.msra.mxu0 0
        %331 = vmatprep.subr.bf16.mxu0 0
        %332 = vmatpush1.bf16.msra.mxu0 0
        %333 = vmatprep.subr.bf16.mxu0 0
        %334 = vmatpush1.bf16.msra.mxu0 0
        %335 = vmatprep.mubr.bf16.mxu0 0
        %336 = vmatmul.mubr.bf16.gmra.mrb[0].mxu0 %v250
        %v337 = vpop.f32.mrb[0].mxu0
        %v338 = vadd.f32 0.0, %v337
        %v339 = vpop.f32.mrb[0].mxu0
        %v340 = vpop.f32.mrb[0].mxu0
        %v341 = vpop.f32.mrb[0].mxu0
        %342 = vdwg.mxu0
        %v344 = vsel %vm248, %v218, 0
        %v347 = vsel %vm252, %v230, 0
        %v350 = vsel %vm252, %v238, 0
        %v353 = vsel %vm252, %v237, 0
        %355 = vmatprep.subr.bf16.mxu0 %v350
        %356 = vmatpush1.bf16.msra.mxu0 %v347
        %357 = vmatprep.subr.bf16.mxu0 0
        %358 = vmatpush1.bf16.msra.mxu0 0
        %359 = vmatprep.subr.bf16.mxu0 0
        %360 = vmatpush1.bf16.msra.mxu0 0
        %361 = vmatprep.subr.bf16.mxu0 0
        %362 = vmatpush1.bf16.msra.mxu0 0
        %363 = vmatprep.subr.bf16.mxu0 0
        %364 = vmatpush1.bf16.msra.mxu0 0
        %365 = vmatprep.subr.bf16.mxu0 0
        %366 = vmatpush1.bf16.msra.mxu0 0
        %367 = vmatprep.subr.bf16.mxu0 0
        %368 = vmatpush1.bf16.msra.mxu0 0
        %369 = vmatprep.subr.bf16.mxu0 0
        %370 = vmatpush1.bf16.msra.mxu0 0
        %371 = vmatprep.subr.bf16.mxu0 0
        %372 = vmatpush1.bf16.msra.mxu0 0
        %373 = vmatprep.subr.bf16.mxu0 0
        %374 = vmatpush1.bf16.msra.mxu0 0
        %375 = vmatprep.subr.bf16.mxu0 0
        %376 = vmatpush1.bf16.msra.mxu0 0
        %377 = vmatprep.subr.bf16.mxu0 0
        %378 = vmatpush1.bf16.msra.mxu0 0
        %379 = vmatprep.subr.bf16.mxu0 0
        %380 = vmatpush1.bf16.msra.mxu0 0
        %381 = vmatprep.subr.bf16.mxu0 0
        %382 = vmatpush1.bf16.msra.mxu0 0
        %383 = vmatprep.subr.bf16.mxu0 0
        %384 = vmatpush1.bf16.msra.mxu0 0
        %385 = vmatprep.subr.bf16.mxu0 0
        %386 = vmatpush1.bf16.msra.mxu0 0
        %387 = vmatprep.mubr.bf16.mxu0 0
        %388 = vmatmul.mubr.bf16.gmra.mrb[0].mxu0 %v344
        %v389 = vpop.f32.mrb[0].mxu0
        %v390 = vadd.f32 %v297, %v389
        %v391 = vpop.f32.mrb[0].mxu0
        %v392 = vadd.f32 %v299, %v391
        %v393 = vpop.f32.mrb[0].mxu0
        %v394 = vpop.f32.mrb[0].mxu0
        %395 = vdwg.mxu0
        %396 = vmatprep.subr.bf16.mxu0 0
        %397 = vmatpush1.bf16.msra.mxu0 %v353
        %398 = vmatprep.subr.bf16.mxu0 0
        %399 = vmatpush1.bf16.msra.mxu0 0
        %400 = vmatprep.subr.bf16.mxu0 0
        %401 = vmatpush1.bf16.msra.mxu0 0
        %402 = vmatprep.subr.bf16.mxu0 0
        %403 = vmatpush1.bf16.msra.mxu0 0
        %404 = vmatprep.subr.bf16.mxu0 0
        %405 = vmatpush1.bf16.msra.mxu0 0
        %406 = vmatprep.subr.bf16.mxu0 0
        %407 = vmatpush1.bf16.msra.mxu0 0
        %408 = vmatprep.subr.bf16.mxu0 0
        %409 = vmatpush1.bf16.msra.mxu0 0
        %410 = vmatprep.subr.bf16.mxu0 0
        %411 = vmatpush1.bf16.msra.mxu0 0
        %412 = vmatprep.subr.bf16.mxu0 0
        %413 = vmatpush1.bf16.msra.mxu0 0
        %414 = vmatprep.subr.bf16.mxu0 0
        %415 = vmatpush1.bf16.msra.mxu0 0
        %416 = vmatprep.subr.bf16.mxu0 0
        %417 = vmatpush1.bf16.msra.mxu0 0
        %418 = vmatprep.subr.bf16.mxu0 0
        %419 = vmatpush1.bf16.msra.mxu0 0
        %420 = vmatprep.subr.bf16.mxu0 0
        %421 = vmatpush1.bf16.msra.mxu0 0
        %422 = vmatprep.subr.bf16.mxu0 0
        %423 = vmatpush1.bf16.msra.mxu0 0
        %424 = vmatprep.subr.bf16.mxu0 0
        %425 = vmatpush1.bf16.msra.mxu0 0
        %426 = vmatprep.subr.bf16.mxu0 0
        %427 = vmatpush1.bf16.msra.mxu0 0
        %428 = vmatprep.mubr.bf16.mxu0 0
        %429 = vmatmul.mubr.bf16.gmra.mrb[0].mxu0 %v344
        %v430 = vpop.f32.mrb[0].mxu0
        %v431 = vadd.f32 %v338, %v430
        %v432 = vpop.f32.mrb[0].mxu0
        %v433 = vpop.f32.mrb[0].mxu0
        %v434 = vpop.f32.mrb[0].mxu0
        %435 = vdwg.mxu0
        %s436 = scalar_lea.vmem %s212, 8
        %v437 = vld [vmem:[%s436] sm:$0xf]
        %v438 = vld [vmem:[%s208] sm:$0x3f]
        %v440 = vcombine.high %v438, %v438
        %v442 = vunpack.c.l.s4 1983009808
        %v443 = vunpack.c.0.s8 %v442
        %v444 = vlaneseq
        %v445 = vshrl.u32 %v444, 7
        %v446 = vsub.s32 %v443, %v445
        %v447 = vrot.slane %v438, %v446
        %v449 = vunpack.c.l.s4 1983009808
        %v450 = vunpack.c.0.s8 %v449
        %v451 = vlaneseq
        %v452 = vshrl.u32 %v451, 7
        %v453 = vsub.s32 %v450, %v452
        %v454 = vrot.slane %v440, %v453
        %v455 = vcombine.high %v447, %v447
        %456 = vrot.lane.b32.xlu0 %v447, 126
        %v457 = vpop.permute.xlu0 %456
        %458 = vrot.lane.b32.xlu0 %v455, 126
        %v459 = vpop.permute.xlu0 %458
        %460 = vrot.lane.b32.xlu0 %v454, 126
        %v461 = vpop.permute.xlu0 %460
        %vm462 = vcmask 1031168
        %v463 = vsel %vm462, %v457, %v459
        %v464 = vsel %vm462, %v459, %v461
        %v466 = vsel %vm248, %v437, 0
        %v469 = vsel %vm252, %v463, 0
        %v472 = vsel %vm252, %v464, 0
        %v475 = vsel %vm252, %v461, 0
        %477 = vmatprep.subr.bf16.mxu0 %v472
        %478 = vmatpush1.bf16.msra.mxu0 %v469
        %479 = vmatprep.subr.bf16.mxu0 0
        %480 = vmatpush1.bf16.msra.mxu0 0
        %481 = vmatprep.subr.bf16.mxu0 0
        %482 = vmatpush1.bf16.msra.mxu0 0
        %483 = vmatprep.subr.bf16.mxu0 0
        %484 = vmatpush1.bf16.msra.mxu0 0
        %485 = vmatprep.subr.bf16.mxu0 0
        %486 = vmatpush1.bf16.msra.mxu0 0
        %487 = vmatprep.subr.bf16.mxu0 0
        %488 = vmatpush1.bf16.msra.mxu0 0
        %489 = vmatprep.subr.bf16.mxu0 0
        %490 = vmatpush1.bf16.msra.mxu0 0
        %491 = vmatprep.subr.bf16.mxu0 0
        %492 = vmatpush1.bf16.msra.mxu0 0
        %493 = vmatprep.subr.bf16.mxu0 0
        %494 = vmatpush1.bf16.msra.mxu0 0
        %495 = vmatprep.subr.bf16.mxu0 0
        %496 = vmatpush1.bf16.msra.mxu0 0
        %497 = vmatprep.subr.bf16.mxu0 0
        %498 = vmatpush1.bf16.msra.mxu0 0
        %499 = vmatprep.subr.bf16.mxu0 0
        %500 = vmatpush1.bf16.msra.mxu0 0
        %501 = vmatprep.subr.bf16.mxu0 0
        %502 = vmatpush1.bf16.msra.mxu0 0
        %503 = vmatprep.subr.bf16.mxu0 0
        %504 = vmatpush1.bf16.msra.mxu0 0
        %505 = vmatprep.subr.bf16.mxu0 0
        %506 = vmatpush1.bf16.msra.mxu0 0
        %507 = vmatprep.subr.bf16.mxu0 0
        %508 = vmatpush1.bf16.msra.mxu0 0
        %509 = vmatprep.mubr.bf16.mxu0 0
        %510 = vmatmul.mubr.bf16.gmra.mrb[0].mxu0 %v466
        %v511 = vpop.f32.mrb[0].mxu0
        %v512 = vadd.f32 0.0, %v511
        %v513 = vpop.f32.mrb[0].mxu0
        %v514 = vadd.f32 0.0, %v513
        %v515 = vpop.f32.mrb[0].mxu0
        %v516 = vpop.f32.mrb[0].mxu0
        %517 = vdwg.mxu0
        %518 = vmatprep.subr.bf16.mxu0 0
        %519 = vmatpush1.bf16.msra.mxu0 %v475
        %520 = vmatprep.subr.bf16.mxu0 0
        %521 = vmatpush1.bf16.msra.mxu0 0
        %522 = vmatprep.subr.bf16.mxu0 0
        %523 = vmatpush1.bf16.msra.mxu0 0
        %524 = vmatprep.subr.bf16.mxu0 0
        %525 = vmatpush1.bf16.msra.mxu0 0
        %526 = vmatprep.subr.bf16.mxu0 0
        %527 = vmatpush1.bf16.msra.mxu0 0
        %528 = vmatprep.subr.bf16.mxu0 0
        %529 = vmatpush1.bf16.msra.mxu0 0
        %530 = vmatprep.subr.bf16.mxu0 0
        %531 = vmatpush1.bf16.msra.mxu0 0
        %532 = vmatprep.subr.bf16.mxu0 0
        %533 = vmatpush1.bf16.msra.mxu0 0
        %534 = vmatprep.subr.bf16.mxu0 0
        %535 = vmatpush1.bf16.msra.mxu0 0
        %536 = vmatprep.subr.bf16.mxu0 0
        %537 = vmatpush1.bf16.msra.mxu0 0
        %538 = vmatprep.subr.bf16.mxu0 0
        %539 = vmatpush1.bf16.msra.mxu0 0
        %540 = vmatprep.subr.bf16.mxu0 0
        %541 = vmatpush1.bf16.msra.mxu0 0
        %542 = vmatprep.subr.bf16.mxu0 0
        %543 = vmatpush1.bf16.msra.mxu0 0
        %544 = vmatprep.subr.bf16.mxu0 0
        %545 = vmatpush1.bf16.msra.mxu0 0
        %546 = vmatprep.subr.bf16.mxu0 0
        %547 = vmatpush1.bf16.msra.mxu0 0
        %548 = vmatprep.subr.bf16.mxu0 0
        %549 = vmatpush1.bf16.msra.mxu0 0
        %550 = vmatprep.mubr.bf16.mxu0 0
        %551 = vmatmul.mubr.bf16.gmra.mrb[0].mxu0 %v466
        %v552 = vpop.f32.mrb[0].mxu0
        %v553 = vadd.f32 0.0, %v552
        %v554 = vpop.f32.mrb[0].mxu0
        %v555 = vpop.f32.mrb[0].mxu0
        %v556 = vpop.f32.mrb[0].mxu0
        %557 = vdwg.mxu0
        %v558 = vadd.f32 %v390, %v512
        %v559 = vadd.f32 %v392, %v514
        %v560 = vadd.f32 %v431, %v553
        %s561 = scalar_lea.vmem %s212, 12
        %v562 = vld [vmem:[%s561] sm:$0xf]
        %v563 = vld [vmem:[%s208] sm:$0x3f]
        %v565 = vcombine.high %v563, %v563
        %v567 = vunpack.c.l.s4 1983009808
        %v568 = vunpack.c.0.s8 %v567
        %v569 = vlaneseq
        %v570 = vshrl.u32 %v569, 7
        %v571 = vsub.s32 %v568, %v570
        %v572 = vrot.slane %v563, %v571
        %v574 = vunpack.c.l.s4 1983009808
        %v575 = vunpack.c.0.s8 %v574
        %v576 = vlaneseq
        %v577 = vshrl.u32 %v576, 7
        %v578 = vsub.s32 %v575, %v577
        %v579 = vrot.slane %v565, %v578
        %v580 = vcombine.high %v572, %v572
        %581 = vrot.lane.b32.xlu0 %v572, 110
        %v582 = vpop.permute.xlu0 %581
        %583 = vrot.lane.b32.xlu0 %v580, 110
        %v584 = vpop.permute.xlu0 %583
        %585 = vrot.lane.b32.xlu0 %v579, 110
        %v586 = vpop.permute.xlu0 %585
        %vm587 = vcmask 900096
        %v588 = vsel %vm587, %v582, %v584
        %v589 = vsel %vm587, %v584, %v586
        %v591 = vsel %vm248, %v562, 0
        %v594 = vsel %vm252, %v588, 0
        %v597 = vsel %vm252, %v589, 0
        %v600 = vsel %vm252, %v586, 0
        %602 = vmatprep.subr.bf16.mxu0 %v597
        %603 = vmatpush1.bf16.msra.mxu0 %v594
        %604 = vmatprep.subr.bf16.mxu0 0
        %605 = vmatpush1.bf16.msra.mxu0 0
        %606 = vmatprep.subr.bf16.mxu0 0
        %607 = vmatpush1.bf16.msra.mxu0 0
        %608 = vmatprep.subr.bf16.mxu0 0
        %609 = vmatpush1.bf16.msra.mxu0 0
        %610 = vmatprep.subr.bf16.mxu0 0
        %611 = vmatpush1.bf16.msra.mxu0 0
        %612 = vmatprep.subr.bf16.mxu0 0
        %613 = vmatpush1.bf16.msra.mxu0 0
        %614 = vmatprep.subr.bf16.mxu0 0
        %615 = vmatpush1.bf16.msra.mxu0 0
        %616 = vmatprep.subr.bf16.mxu0 0
        %617 = vmatpush1.bf16.msra.mxu0 0
        %618 = vmatprep.subr.bf16.mxu0 0
        %619 = vmatpush1.bf16.msra.mxu0 0
        %620 = vmatprep.subr.bf16.mxu0 0
        %621 = vmatpush1.bf16.msra.mxu0 0
        %622 = vmatprep.subr.bf16.mxu0 0
        %623 = vmatpush1.bf16.msra.mxu0 0
        %624 = vmatprep.subr.bf16.mxu0 0
        %625 = vmatpush1.bf16.msra.mxu0 0
        %626 = vmatprep.subr.bf16.mxu0 0
        %627 = vmatpush1.bf16.msra.mxu0 0
        %628 = vmatprep.subr.bf16.mxu0 0
        %629 = vmatpush1.bf16.msra.mxu0 0
        %630 = vmatprep.subr.bf16.mxu0 0
        %631 = vmatpush1.bf16.msra.mxu0 0
        %632 = vmatprep.subr.bf16.mxu0 0
        %633 = vmatpush1.bf16.msra.mxu0 0
        %634 = vmatprep.mubr.bf16.mxu0 0
        %635 = vmatmul.mubr.bf16.gmra.mrb[0].mxu0 %v591
        %v636 = vpop.f32.mrb[0].mxu0
        %v637 = vadd.f32 0.0, %v636
        %v638 = vpop.f32.mrb[0].mxu0
        %v639 = vadd.f32 0.0, %v638
        %v640 = vpop.f32.mrb[0].mxu0
        %v641 = vpop.f32.mrb[0].mxu0
        %642 = vdwg.mxu0
        %643 = vmatprep.subr.bf16.mxu0 0
        %644 = vmatpush1.bf16.msra.mxu0 %v600
        %645 = vmatprep.subr.bf16.mxu0 0
        %646 = vmatpush1.bf16.msra.mxu0 0
        %647 = vmatprep.subr.bf16.mxu0 0
        %648 = vmatpush1.bf16.msra.mxu0 0
        %649 = vmatprep.subr.bf16.mxu0 0
        %650 = vmatpush1.bf16.msra.mxu0 0
        %651 = vmatprep.subr.bf16.mxu0 0
        %652 = vmatpush1.bf16.msra.mxu0 0
        %653 = vmatprep.subr.bf16.mxu0 0
        %654 = vmatpush1.bf16.msra.mxu0 0
        %655 = vmatprep.subr.bf16.mxu0 0
        %656 = vmatpush1.bf16.msra.mxu0 0
        %657 = vmatprep.subr.bf16.mxu0 0
        %658 = vmatpush1.bf16.msra.mxu0 0
        %659 = vmatprep.subr.bf16.mxu0 0
        %660 = vmatpush1.bf16.msra.mxu0 0
        %661 = vmatprep.subr.bf16.mxu0 0
        %662 = vmatpush1.bf16.msra.mxu0 0
        %663 = vmatprep.subr.bf16.mxu0 0
        %664 = vmatpush1.bf16.msra.mxu0 0
        %665 = vmatprep.subr.bf16.mxu0 0
        %666 = vmatpush1.bf16.msra.mxu0 0
        %667 = vmatprep.subr.bf16.mxu0 0
        %668 = vmatpush1.bf16.msra.mxu0 0
        %669 = vmatprep.subr.bf16.mxu0 0
        %670 = vmatpush1.bf16.msra.mxu0 0
        %671 = vmatprep.subr.bf16.mxu0 0
        %672 = vmatpush1.bf16.msra.mxu0 0
        %673 = vmatprep.subr.bf16.mxu0 0
        %674 = vmatpush1.bf16.msra.mxu0 0
        %675 = vmatprep.mubr.bf16.mxu0 0
        %676 = vmatmul.mubr.bf16.gmra.mrb[0].mxu0 %v591
        %v677 = vpop.f32.mrb[0].mxu0
        %v678 = vadd.f32 0.0, %v677
        %v679 = vpop.f32.mrb[0].mxu0
        %v680 = vpop.f32.mrb[0].mxu0
        %v681 = vpop.f32.mrb[0].mxu0
        %682 = vdwg.mxu0
        %v683 = vadd.f32 %v558, %v637
        %v684 = vadd.f32 %v559, %v639
        %v685 = vadd.f32 %v560, %v678
        %s686 = scalar_lea.vmem %s212, 16
        %v687 = vld [vmem:[%s686] sm:$0xf]
        %v688 = vld [vmem:[%s208] sm:$0x3f]
        %v690 = vcombine.high %v688, %v688
        %v692 = vunpack.c.l.s4 1983009808
        %v693 = vunpack.c.0.s8 %v692
        %v694 = vlaneseq
        %v695 = vshrl.u32 %v694, 7
        %v696 = vsub.s32 %v693, %v695
        %v697 = vrot.slane %v688, %v696
        %v699 = vunpack.c.l.s4 1983009808
        %v700 = vunpack.c.0.s8 %v699
        %v701 = vlaneseq
        %v702 = vshrl.u32 %v701, 7
        %v703 = vsub.s32 %v700, %v702
        %v704 = vrot.slane %v690, %v703
        %v705 = vcombine.high %v697, %v697
        %706 = vrot.lane.b32.xlu0 %v697, 109
        %v707 = vpop.permute.xlu0 %706
        %708 = vrot.lane.b32.xlu0 %v705, 109
        %v709 = vpop.permute.xlu0 %708
        %710 = vrot.lane.b32.xlu0 %v704, 109
        %v711 = vpop.permute.xlu0 %710
        %vm712 = vcmask 891904
        %v713 = vsel %vm712, %v707, %v709
        %v714 = vsel %vm712, %v709, %v711
        %v716 = vsel %vm248, %v687, 0
        %v719 = vsel %vm252, %v713, 0
        %v722 = vsel %vm252, %v714, 0
        %v725 = vsel %vm252, %v711, 0
        %727 = vmatprep.subr.bf16.mxu0 %v722
        %728 = vmatpush1.bf16.msra.mxu0 %v719
        %729 = vmatprep.subr.bf16.mxu0 0
        %730 = vmatpush1.bf16.msra.mxu0 0
        %731 = vmatprep.subr.bf16.mxu0 0
        %732 = vmatpush1.bf16.msra.mxu0 0
        %733 = vmatprep.subr.bf16.mxu0 0
        %734 = vmatpush1.bf16.msra.mxu0 0
        %735 = vmatprep.subr.bf16.mxu0 0
        %736 = vmatpush1.bf16.msra.mxu0 0
        %737 = vmatprep.subr.bf16.mxu0 0
        %738 = vmatpush1.bf16.msra.mxu0 0
        %739 = vmatprep.subr.bf16.mxu0 0
        %740 = vmatpush1.bf16.msra.mxu0 0
        %741 = vmatprep.subr.bf16.mxu0 0
        %742 = vmatpush1.bf16.msra.mxu0 0
        %743 = vmatprep.subr.bf16.mxu0 0
        %744 = vmatpush1.bf16.msra.mxu0 0
        %745 = vmatprep.subr.bf16.mxu0 0
        %746 = vmatpush1.bf16.msra.mxu0 0
        %747 = vmatprep.subr.bf16.mxu0 0
        %748 = vmatpush1.bf16.msra.mxu0 0
        %749 = vmatprep.subr.bf16.mxu0 0
        %750 = vmatpush1.bf16.msra.mxu0 0
        %751 = vmatprep.subr.bf16.mxu0 0
        %752 = vmatpush1.bf16.msra.mxu0 0
        %753 = vmatprep.subr.bf16.mxu0 0
        %754 = vmatpush1.bf16.msra.mxu0 0
        %755 = vmatprep.subr.bf16.mxu0 0
        %756 = vmatpush1.bf16.msra.mxu0 0
        %757 = vmatprep.subr.bf16.mxu0 0
        %758 = vmatpush1.bf16.msra.mxu0 0
        %759 = vmatprep.mubr.bf16.mxu0 0
        %760 = vmatmul.mubr.bf16.gmra.mrb[0].mxu0 %v716
        %v761 = vpop.f32.mrb[0].mxu0
        %v762 = vadd.f32 0.0, %v761
        %v763 = vpop.f32.mrb[0].mxu0
        %v764 = vadd.f32 0.0, %v763
        %v765 = vpop.f32.mrb[0].mxu0
        %v766 = vpop.f32.mrb[0].mxu0
        %767 = vdwg.mxu0
        %768 = vmatprep.subr.bf16.mxu0 0
        %769 = vmatpush1.bf16.msra.mxu0 %v725
        %770 = vmatprep.subr.bf16.mxu0 0
        %771 = vmatpush1.bf16.msra.mxu0 0
        %772 = vmatprep.subr.bf16.mxu0 0
        %773 = vmatpush1.bf16.msra.mxu0 0
        %774 = vmatprep.subr.bf16.mxu0 0
        %775 = vmatpush1.bf16.msra.mxu0 0
        %776 = vmatprep.subr.bf16.mxu0 0
        %777 = vmatpush1.bf16.msra.mxu0 0
        %778 = vmatprep.subr.bf16.mxu0 0
        %779 = vmatpush1.bf16.msra.mxu0 0
        %780 = vmatprep.subr.bf16.mxu0 0
        %781 = vmatpush1.bf16.msra.mxu0 0
        %782 = vmatprep.subr.bf16.mxu0 0
        %783 = vmatpush1.bf16.msra.mxu0 0
        %784 = vmatprep.subr.bf16.mxu0 0
        %785 = vmatpush1.bf16.msra.mxu0 0
        %786 = vmatprep.subr.bf16.mxu0 0
        %787 = vmatpush1.bf16.msra.mxu0 0
        %788 = vmatprep.subr.bf16.mxu0 0
        %789 = vmatpush1.bf16.msra.mxu0 0
        %790 = vmatprep.subr.bf16.mxu0 0
        %791 = vmatpush1.bf16.msra.mxu0 0
        %792 = vmatprep.subr.bf16.mxu0 0
        %793 = vmatpush1.bf16.msra.mxu0 0
        %794 = vmatprep.subr.bf16.mxu0 0
        %795 = vmatpush1.bf16.msra.mxu0 0
        %796 = vmatprep.subr.bf16.mxu0 0
        %797 = vmatpush1.bf16.msra.mxu0 0
        %798 = vmatprep.subr.bf16.mxu0 0
        %799 = vmatpush1.bf16.msra.mxu0 0
        %800 = vmatprep.mubr.bf16.mxu0 0
        %801 = vmatmul.mubr.bf16.gmra.mrb[0].mxu0 %v716
        %v802 = vpop.f32.mrb[0].mxu0
        %v803 = vadd.f32 0.0, %v802
        %v804 = vpop.f32.mrb[0].mxu0
        %v805 = vpop.f32.mrb[0].mxu0
        %v806 = vpop.f32.mrb[0].mxu0
        %807 = vdwg.mxu0
        %v808 = vadd.f32 %v683, %v762
        %v809 = vadd.f32 %v684, %v764
        %v810 = vadd.f32 %v685, %v803
        %s811 = scalar_lea.vmem %s212, 20
        %v812 = vld [vmem:[%s811] sm:$0xf]
        %v813 = vld [vmem:[%s208] sm:$0x3f]
        %v815 = vcombine.high %v813, %v813
        %v817 = vunpack.c.l.s4 1983009808
        %v818 = vunpack.c.0.s8 %v817
        %v819 = vlaneseq
        %v820 = vshrl.u32 %v819, 7
        %v821 = vsub.s32 %v818, %v820
        %v822 = vrot.slane %v813, %v821
        %v824 = vunpack.c.l.s4 1983009808
        %v825 = vunpack.c.0.s8 %v824
        %v826 = vlaneseq
        %v827 = vshrl.u32 %v826, 7
        %v828 = vsub.s32 %v825, %v827
        %v829 = vrot.slane %v815, %v828
        %v830 = vcombine.high %v822, %v822
        %831 = vrot.lane.b32.xlu0 %v822, 108
        %v832 = vpop.permute.xlu0 %831
        %833 = vrot.lane.b32.xlu0 %v830, 108
        %v834 = vpop.permute.xlu0 %833
        %835 = vrot.lane.b32.xlu0 %v829, 108
        %v836 = vpop.permute.xlu0 %835
        %vm837 = vcmask 883712
        %v838 = vsel %vm837, %v832, %v834
        %v839 = vsel %vm837, %v834, %v836
        %v841 = vsel %vm248, %v812, 0
        %v844 = vsel %vm252, %v838, 0
        %v847 = vsel %vm252, %v839, 0
        %v850 = vsel %vm252, %v836, 0
        %852 = vmatprep.subr.bf16.mxu0 %v847
        %853 = vmatpush1.bf16.msra.mxu0 %v844
        %854 = vmatprep.subr.bf16.mxu0 0
        %855 = vmatpush1.bf16.msra.mxu0 0
        %856 = vmatprep.subr.bf16.mxu0 0
        %857 = vmatpush1.bf16.msra.mxu0 0
        %858 = vmatprep.subr.bf16.mxu0 0
        %859 = vmatpush1.bf16.msra.mxu0 0
        %860 = vmatprep.subr.bf16.mxu0 0
        %861 = vmatpush1.bf16.msra.mxu0 0
        %862 = vmatprep.subr.bf16.mxu0 0
        %863 = vmatpush1.bf16.msra.mxu0 0
        %864 = vmatprep.subr.bf16.mxu0 0
        %865 = vmatpush1.bf16.msra.mxu0 0
        %866 = vmatprep.subr.bf16.mxu0 0
        %867 = vmatpush1.bf16.msra.mxu0 0
        %868 = vmatprep.subr.bf16.mxu0 0
        %869 = vmatpush1.bf16.msra.mxu0 0
        %870 = vmatprep.subr.bf16.mxu0 0
        %871 = vmatpush1.bf16.msra.mxu0 0
        %872 = vmatprep.subr.bf16.mxu0 0
        %873 = vmatpush1.bf16.msra.mxu0 0
        %874 = vmatprep.subr.bf16.mxu0 0
        %875 = vmatpush1.bf16.msra.mxu0 0
        %876 = vmatprep.subr.bf16.mxu0 0
        %877 = vmatpush1.bf16.msra.mxu0 0
        %878 = vmatprep.subr.bf16.mxu0 0
        %879 = vmatpush1.bf16.msra.mxu0 0
        %880 = vmatprep.subr.bf16.mxu0 0
        %881 = vmatpush1.bf16.msra.mxu0 0
        %882 = vmatprep.subr.bf16.mxu0 0
        %883 = vmatpush1.bf16.msra.mxu0 0
        %884 = vmatprep.mubr.bf16.mxu0 0
        %885 = vmatmul.mubr.bf16.gmra.mrb[0].mxu0 %v841
        %v886 = vpop.f32.mrb[0].mxu0
        %v887 = vadd.f32 0.0, %v886
        %v888 = vpop.f32.mrb[0].mxu0
        %v889 = vadd.f32 0.0, %v888
        %v890 = vpop.f32.mrb[0].mxu0
        %v891 = vpop.f32.mrb[0].mxu0
        %892 = vdwg.mxu0
        %893 = vmatprep.subr.bf16.mxu0 0
        %894 = vmatpush1.bf16.msra.mxu0 %v850
        %895 = vmatprep.subr.bf16.mxu0 0
        %896 = vmatpush1.bf16.msra.mxu0 0
        %897 = vmatprep.subr.bf16.mxu0 0
        %898 = vmatpush1.bf16.msra.mxu0 0
        %899 = vmatprep.subr.bf16.mxu0 0
        %900 = vmatpush1.bf16.msra.mxu0 0
        %901 = vmatprep.subr.bf16.mxu0 0
        %902 = vmatpush1.bf16.msra.mxu0 0
        %903 = vmatprep.subr.bf16.mxu0 0
        %904 = vmatpush1.bf16.msra.mxu0 0
        %905 = vmatprep.subr.bf16.mxu0 0
        %906 = vmatpush1.bf16.msra.mxu0 0
        %907 = vmatprep.subr.bf16.mxu0 0
        %908 = vmatpush1.bf16.msra.mxu0 0
        %909 = vmatprep.subr.bf16.mxu0 0
        %910 = vmatpush1.bf16.msra.mxu0 0
        %911 = vmatprep.subr.bf16.mxu0 0
        %912 = vmatpush1.bf16.msra.mxu0 0
        %913 = vmatprep.subr.bf16.mxu0 0
        %914 = vmatpush1.bf16.msra.mxu0 0
        %915 = vmatprep.subr.bf16.mxu0 0
        %916 = vmatpush1.bf16.msra.mxu0 0
        %917 = vmatprep.subr.bf16.mxu0 0
        %918 = vmatpush1.bf16.msra.mxu0 0
        %919 = vmatprep.subr.bf16.mxu0 0
        %920 = vmatpush1.bf16.msra.mxu0 0
        %921 = vmatprep.subr.bf16.mxu0 0
        %922 = vmatpush1.bf16.msra.mxu0 0
        %923 = vmatprep.subr.bf16.mxu0 0
        %924 = vmatpush1.bf16.msra.mxu0 0
        %925 = vmatprep.mubr.bf16.mxu0 0
        %926 = vmatmul.mubr.bf16.gmra.mrb[0].mxu0 %v841
        %v927 = vpop.f32.mrb[0].mxu0
        %v928 = vadd.f32 0.0, %v927
        %v929 = vpop.f32.mrb[0].mxu0
        %v930 = vpop.f32.mrb[0].mxu0
        %v931 = vpop.f32.mrb[0].mxu0
        %932 = vdwg.mxu0
        %v933 = vadd.f32 %v808, %v887
        %v934 = vadd.f32 %v809, %v889
        %v935 = vadd.f32 %v810, %v928
        %s936 = scalar_lea.vmem %s212, 24
        %v937 = vld [vmem:[%s936] sm:$0xf]
        %v938 = vld [vmem:[%s208] sm:$0x3f]
        %v940 = vcombine.high %v938, %v938
        %v942 = vunpack.c.l.s4 1983009808
        %v943 = vunpack.c.0.s8 %v942
        %v944 = vlaneseq
        %v945 = vshrl.u32 %v944, 7
        %v946 = vsub.s32 %v943, %v945
        %v947 = vrot.slane %v938, %v946
        %v949 = vunpack.c.l.s4 1983009808
        %v950 = vunpack.c.0.s8 %v949
        %v951 = vlaneseq
        %v952 = vshrl.u32 %v951, 7
        %v953 = vsub.s32 %v950, %v952
        %v954 = vrot.slane %v940, %v953
        %v955 = vcombine.high %v947, %v947
        %956 = vrot.lane.b32.xlu0 %v947, 92
        %v957 = vpop.permute.xlu0 %956
        %958 = vrot.lane.b32.xlu0 %v955, 92
        %v959 = vpop.permute.xlu0 %958
        %960 = vrot.lane.b32.xlu0 %v954, 92
        %v961 = vpop.permute.xlu0 %960
        %vm962 = vcmask 752640
        %v963 = vsel %vm962, %v957, %v959
        %v964 = vsel %vm962, %v959, %v961
        %v966 = vsel %vm248, %v937, 0
        %v969 = vsel %vm252, %v963, 0
        %v972 = vsel %vm252, %v964, 0
        %v975 = vsel %vm252, %v961, 0
        %977 = vmatprep.subr.bf16.mxu0 %v972
        %978 = vmatpush1.bf16.msra.mxu0 %v969
        %979 = vmatprep.subr.bf16.mxu0 0
        %980 = vmatpush1.bf16.msra.mxu0 0
        %981 = vmatprep.subr.bf16.mxu0 0
        %982 = vmatpush1.bf16.msra.mxu0 0
        %983 = vmatprep.subr.bf16.mxu0 0
        %984 = vmatpush1.bf16.msra.mxu0 0
        %985 = vmatprep.subr.bf16.mxu0 0
        %986 = vmatpush1.bf16.msra.mxu0 0
        %987 = vmatprep.subr.bf16.mxu0 0
        %988 = vmatpush1.bf16.msra.mxu0 0
        %989 = vmatprep.subr.bf16.mxu0 0
        %990 = vmatpush1.bf16.msra.mxu0 0
        %991 = vmatprep.subr.bf16.mxu0 0
        %992 = vmatpush1.bf16.msra.mxu0 0
        %993 = vmatprep.subr.bf16.mxu0 0
        %994 = vmatpush1.bf16.msra.mxu0 0
        %995 = vmatprep.subr.bf16.mxu0 0
        %996 = vmatpush1.bf16.msra.mxu0 0
        %997 = vmatprep.subr.bf16.mxu0 0
        %998 = vmatpush1.bf16.msra.mxu0 0
        %999 = vmatprep.subr.bf16.mxu0 0
        %1000 = vmatpush1.bf16.msra.mxu0 0
        %1001 = vmatprep.subr.bf16.mxu0 0
        %1002 = vmatpush1.bf16.msra.mxu0 0
        %1003 = vmatprep.subr.bf16.mxu0 0
        %1004 = vmatpush1.bf16.msra.mxu0 0
        %1005 = vmatprep.subr.bf16.mxu0 0
        %1006 = vmatpush1.bf16.msra.mxu0 0
        %1007 = vmatprep.subr.bf16.mxu0 0
        %1008 = vmatpush1.bf16.msra.mxu0 0
        %1009 = vmatprep.mubr.bf16.mxu0 0
        %1010 = vmatmul.mubr.bf16.gmra.mrb[0].mxu0 %v966
        %v1011 = vpop.f32.mrb[0].mxu0
        %v1012 = vadd.f32 0.0, %v1011
        %v1013 = vpop.f32.mrb[0].mxu0
        %v1014 = vadd.f32 0.0, %v1013
        %v1015 = vpop.f32.mrb[0].mxu0
        %v1016 = vpop.f32.mrb[0].mxu0
        %1017 = vdwg.mxu0
        %1018 = vmatprep.subr.bf16.mxu0 0
        %1019 = vmatpush1.bf16.msra.mxu0 %v975
        %1020 = vmatprep.subr.bf16.mxu0 0
        %1021 = vmatpush1.bf16.msra.mxu0 0
        %1022 = vmatprep.subr.bf16.mxu0 0
        %1023 = vmatpush1.bf16.msra.mxu0 0
        %1024 = vmatprep.subr.bf16.mxu0 0
        %1025 = vmatpush1.bf16.msra.mxu0 0
        %1026 = vmatprep.subr.bf16.mxu0 0
        %1027 = vmatpush1.bf16.msra.mxu0 0
        %1028 = vmatprep.subr.bf16.mxu0 0
        %1029 = vmatpush1.bf16.msra.mxu0 0
        %1030 = vmatprep.subr.bf16.mxu0 0
        %1031 = vmatpush1.bf16.msra.mxu0 0
        %1032 = vmatprep.subr.bf16.mxu0 0
        %1033 = vmatpush1.bf16.msra.mxu0 0
        %1034 = vmatprep.subr.bf16.mxu0 0
        %1035 = vmatpush1.bf16.msra.mxu0 0
        %1036 = vmatprep.subr.bf16.mxu0 0
        %1037 = vmatpush1.bf16.msra.mxu0 0
        %1038 = vmatprep.subr.bf16.mxu0 0
        %1039 = vmatpush1.bf16.msra.mxu0 0
        %1040 = vmatprep.subr.bf16.mxu0 0
        %1041 = vmatpush1.bf16.msra.mxu0 0
        %1042 = vmatprep.subr.bf16.mxu0 0
        %1043 = vmatpush1.bf16.msra.mxu0 0
        %1044 = vmatprep.subr.bf16.mxu0 0
        %1045 = vmatpush1.bf16.msra.mxu0 0
        %1046 = vmatprep.subr.bf16.mxu0 0
        %1047 = vmatpush1.bf16.msra.mxu0 0
        %1048 = vmatprep.subr.bf16.mxu0 0
        %1049 = vmatpush1.bf16.msra.mxu0 0
        %1050 = vmatprep.mubr.bf16.mxu0 0
        %1051 = vmatmul.mubr.bf16.gmra.mrb[0].mxu0 %v966
        %v1052 = vpop.f32.mrb[0].mxu0
        %v1053 = vadd.f32 0.0, %v1052
        %v1054 = vpop.f32.mrb[0].mxu0
        %v1055 = vpop.f32.mrb[0].mxu0
        %v1056 = vpop.f32.mrb[0].mxu0
        %1057 = vdwg.mxu0
        %v1058 = vadd.f32 %v933, %v1012
        %v1059 = vadd.f32 %v934, %v1014
        %v1060 = vadd.f32 %v935, %v1053
        %s1061 = scalar_lea.vmem %s212, 28
        %v1062 = vld [vmem:[%s1061] sm:$0xf]
        %v1063 = vld [vmem:[%s208] sm:$0x3f]
        %v1065 = vcombine.high %v1063, %v1063
        %v1067 = vunpack.c.l.s4 1983009808
        %v1068 = vunpack.c.0.s8 %v1067
        %v1069 = vlaneseq
        %v1070 = vshrl.u32 %v1069, 7
        %v1071 = vsub.s32 %v1068, %v1070
        %v1072 = vrot.slane %v1063, %v1071
        %v1074 = vunpack.c.l.s4 1983009808
        %v1075 = vunpack.c.0.s8 %v1074
        %v1076 = vlaneseq
        %v1077 = vshrl.u32 %v1076, 7
        %v1078 = vsub.s32 %v1075, %v1077
        %v1079 = vrot.slane %v1065, %v1078
        %v1080 = vcombine.high %v1072, %v1072
        %1081 = vrot.lane.b32.xlu0 %v1072, 91
        %v1082 = vpop.permute.xlu0 %1081
        %1083 = vrot.lane.b32.xlu0 %v1080, 91
        %v1084 = vpop.permute.xlu0 %1083
        %1085 = vrot.lane.b32.xlu0 %v1079, 91
        %v1086 = vpop.permute.xlu0 %1085
        %vm1087 = vcmask 744448
        %v1088 = vsel %vm1087, %v1082, %v1084
        %v1089 = vsel %vm1087, %v1084, %v1086
        %v1091 = vsel %vm248, %v1062, 0
        %v1094 = vsel %vm252, %v1088, 0
        %v1097 = vsel %vm252, %v1089, 0
        %v1100 = vsel %vm252, %v1086, 0
        %1102 = vmatprep.subr.bf16.mxu0 %v1097
        %1103 = vmatpush1.bf16.msra.mxu0 %v1094
        %1104 = vmatprep.subr.bf16.mxu0 0
        %1105 = vmatpush1.bf16.msra.mxu0 0
        %1106 = vmatprep.subr.bf16.mxu0 0
        %1107 = vmatpush1.bf16.msra.mxu0 0
        %1108 = vmatprep.subr.bf16.mxu0 0
        %1109 = vmatpush1.bf16.msra.mxu0 0
        %1110 = vmatprep.subr.bf16.mxu0 0
        %1111 = vmatpush1.bf16.msra.mxu0 0
        %1112 = vmatprep.subr.bf16.mxu0 0
        %1113 = vmatpush1.bf16.msra.mxu0 0
        %1114 = vmatprep.subr.bf16.mxu0 0
        %1115 = vmatpush1.bf16.msra.mxu0 0
        %1116 = vmatprep.subr.bf16.mxu0 0
        %1117 = vmatpush1.bf16.msra.mxu0 0
        %1118 = vmatprep.subr.bf16.mxu0 0
        %1119 = vmatpush1.bf16.msra.mxu0 0
        %1120 = vmatprep.subr.bf16.mxu0 0
        %1121 = vmatpush1.bf16.msra.mxu0 0
        %1122 = vmatprep.subr.bf16.mxu0 0
        %1123 = vmatpush1.bf16.msra.mxu0 0
        %1124 = vmatprep.subr.bf16.mxu0 0
        %1125 = vmatpush1.bf16.msra.mxu0 0
        %1126 = vmatprep.subr.bf16.mxu0 0
        %1127 = vmatpush1.bf16.msra.mxu0 0
        %1128 = vmatprep.subr.bf16.mxu0 0
        %1129 = vmatpush1.bf16.msra.mxu0 0
        %1130 = vmatprep.subr.bf16.mxu0 0
        %1131 = vmatpush1.bf16.msra.mxu0 0
        %1132 = vmatprep.subr.bf16.mxu0 0
        %1133 = vmatpush1.bf16.msra.mxu0 0
        %1134 = vmatprep.mubr.bf16.mxu0 0
        %1135 = vmatmul.mubr.bf16.gmra.mrb[0].mxu0 %v1091
        %v1136 = vpop.f32.mrb[0].mxu0
        %v1137 = vadd.f32 0.0, %v1136
        %v1138 = vpop.f32.mrb[0].mxu0
        %v1139 = vadd.f32 0.0, %v1138
        %v1140 = vpop.f32.mrb[0].mxu0
        %v1141 = vpop.f32.mrb[0].mxu0
        %1142 = vdwg.mxu0
        %1143 = vmatprep.subr.bf16.mxu0 0
        %1144 = vmatpush1.bf16.msra.mxu0 %v1100
        %1145 = vmatprep.subr.bf16.mxu0 0
        %1146 = vmatpush1.bf16.msra.mxu0 0
        %1147 = vmatprep.subr.bf16.mxu0 0
        %1148 = vmatpush1.bf16.msra.mxu0 0
        %1149 = vmatprep.subr.bf16.mxu0 0
        %1150 = vmatpush1.bf16.msra.mxu0 0
        %1151 = vmatprep.subr.bf16.mxu0 0
        %1152 = vmatpush1.bf16.msra.mxu0 0
        %1153 = vmatprep.subr.bf16.mxu0 0
        %1154 = vmatpush1.bf16.msra.mxu0 0
        %1155 = vmatprep.subr.bf16.mxu0 0
        %1156 = vmatpush1.bf16.msra.mxu0 0
        %1157 = vmatprep.subr.bf16.mxu0 0
        %1158 = vmatpush1.bf16.msra.mxu0 0
        %1159 = vmatprep.subr.bf16.mxu0 0
        %1160 = vmatpush1.bf16.msra.mxu0 0
        %1161 = vmatprep.subr.bf16.mxu0 0
        %1162 = vmatpush1.bf16.msra.mxu0 0
        %1163 = vmatprep.subr.bf16.mxu0 0
        %1164 = vmatpush1.bf16.msra.mxu0 0
        %1165 = vmatprep.subr.bf16.mxu0 0
        %1166 = vmatpush1.bf16.msra.mxu0 0
        %1167 = vmatprep.subr.bf16.mxu0 0
        %1168 = vmatpush1.bf16.msra.mxu0 0
        %1169 = vmatprep.subr.bf16.mxu0 0
        %1170 = vmatpush1.bf16.msra.mxu0 0
        %1171 = vmatprep.subr.bf16.mxu0 0
        %1172 = vmatpush1.bf16.msra.mxu0 0
        %1173 = vmatprep.subr.bf16.mxu0 0
        %1174 = vmatpush1.bf16.msra.mxu0 0
        %1175 = vmatprep.mubr.bf16.mxu0 0
        %1176 = vmatmul.mubr.bf16.gmra.mrb[0].mxu0 %v1091
        %v1177 = vpop.f32.mrb[0].mxu0
        %v1178 = vadd.f32 0.0, %v1177
        %v1179 = vpop.f32.mrb[0].mxu0
        %v1180 = vpop.f32.mrb[0].mxu0
        %v1181 = vpop.f32.mrb[0].mxu0
        %1182 = vdwg.mxu0
        %v1183 = vadd.f32 %v1058, %v1137
        %v1184 = vadd.f32 %v1059, %v1139
        %v1185 = vadd.f32 %v1060, %v1178
        %s1186 = scalar_lea.vmem %s212, 32
        %v1187 = vld [vmem:[%s1186] sm:$0xf]
        %v1188 = vld [vmem:[%s208] sm:$0x3f]
        %v1190 = vcombine.high %v1188, %v1188
        %v1192 = vunpack.c.l.s4 1983009808
        %v1193 = vunpack.c.0.s8 %v1192
        %v1194 = vlaneseq
        %v1195 = vshrl.u32 %v1194, 7
        %v1196 = vsub.s32 %v1193, %v1195
        %v1197 = vrot.slane %v1188, %v1196
        %v1199 = vunpack.c.l.s4 1983009808
        %v1200 = vunpack.c.0.s8 %v1199
        %v1201 = vlaneseq
        %v1202 = vshrl.u32 %v1201, 7
        %v1203 = vsub.s32 %v1200, %v1202
        %v1204 = vrot.slane %v1190, %v1203
        %v1205 = vcombine.high %v1197, %v1197
        %1206 = vrot.lane.b32.xlu0 %v1197, 90
        %v1207 = vpop.permute.xlu0 %1206
        %1208 = vrot.lane.b32.xlu0 %v1205, 90
        %v1209 = vpop.permute.xlu0 %1208
        %1210 = vrot.lane.b32.xlu0 %v1204, 90
        %v1211 = vpop.permute.xlu0 %1210
        %vm1212 = vcmask 736256
        %v1213 = vsel %vm1212, %v1207, %v1209
        %v1214 = vsel %vm1212, %v1209, %v1211
        %v1216 = vsel %vm248, %v1187, 0
        %v1219 = vsel %vm252, %v1213, 0
        %v1222 = vsel %vm252, %v1214, 0
        %v1225 = vsel %vm252, %v1211, 0
        %1227 = vmatprep.subr.bf16.mxu0 %v1222
        %1228 = vmatpush1.bf16.msra.mxu0 %v1219
        %1229 = vmatprep.subr.bf16.mxu0 0
        %1230 = vmatpush1.bf16.msra.mxu0 0
        %1231 = vmatprep.subr.bf16.mxu0 0
        %1232 = vmatpush1.bf16.msra.mxu0 0
        %1233 = vmatprep.subr.bf16.mxu0 0
        %1234 = vmatpush1.bf16.msra.mxu0 0
        %1235 = vmatprep.subr.bf16.mxu0 0
        %1236 = vmatpush1.bf16.msra.mxu0 0
        %1237 = vmatprep.subr.bf16.mxu0 0
        %1238 = vmatpush1.bf16.msra.mxu0 0
        %1239 = vmatprep.subr.bf16.mxu0 0
        %1240 = vmatpush1.bf16.msra.mxu0 0
        %1241 = vmatprep.subr.bf16.mxu0 0
        %1242 = vmatpush1.bf16.msra.mxu0 0
        %1243 = vmatprep.subr.bf16.mxu0 0
        %1244 = vmatpush1.bf16.msra.mxu0 0
        %1245 = vmatprep.subr.bf16.mxu0 0
        %1246 = vmatpush1.bf16.msra.mxu0 0
        %1247 = vmatprep.subr.bf16.mxu0 0
        %1248 = vmatpush1.bf16.msra.mxu0 0
        %1249 = vmatprep.subr.bf16.mxu0 0
        %1250 = vmatpush1.bf16.msra.mxu0 0
        %1251 = vmatprep.subr.bf16.mxu0 0
        %1252 = vmatpush1.bf16.msra.mxu0 0
        %1253 = vmatprep.subr.bf16.mxu0 0
        %1254 = vmatpush1.bf16.msra.mxu0 0
        %1255 = vmatprep.subr.bf16.mxu0 0
        %1256 = vmatpush1.bf16.msra.mxu0 0
        %1257 = vmatprep.subr.bf16.mxu0 0
        %1258 = vmatpush1.bf16.msra.mxu0 0
        %1259 = vmatprep.mubr.bf16.mxu0 0
        %1260 = vmatmul.mubr.bf16.gmra.mrb[0].mxu0 %v1216
        %v1261 = vpop.f32.mrb[0].mxu0
        %v1262 = vadd.f32 0.0, %v1261
        %v1263 = vpop.f32.mrb[0].mxu0
        %v1264 = vadd.f32 0.0, %v1263
        %v1265 = vpop.f32.mrb[0].mxu0
        %v1266 = vpop.f32.mrb[0].mxu0
        %1267 = vdwg.mxu0
        %1268 = vmatprep.subr.bf16.mxu0 0
        %1269 = vmatpush1.bf16.msra.mxu0 %v1225
        %1270 = vmatprep.subr.bf16.mxu0 0
        %1271 = vmatpush1.bf16.msra.mxu0 0
        %1272 = vmatprep.subr.bf16.mxu0 0
        %1273 = vmatpush1.bf16.msra.mxu0 0
        %1274 = vmatprep.subr.bf16.mxu0 0
        %1275 = vmatpush1.bf16.msra.mxu0 0
        %1276 = vmatprep.subr.bf16.mxu0 0
        %1277 = vmatpush1.bf16.msra.mxu0 0
        %1278 = vmatprep.subr.bf16.mxu0 0
        %1279 = vmatpush1.bf16.msra.mxu0 0
        %1280 = vmatprep.subr.bf16.mxu0 0
        %1281 = vmatpush1.bf16.msra.mxu0 0
        %1282 = vmatprep.subr.bf16.mxu0 0
        %1283 = vmatpush1.bf16.msra.mxu0 0
        %1284 = vmatprep.subr.bf16.mxu0 0
        %1285 = vmatpush1.bf16.msra.mxu0 0
        %1286 = vmatprep.subr.bf16.mxu0 0
        %1287 = vmatpush1.bf16.msra.mxu0 0
        %1288 = vmatprep.subr.bf16.mxu0 0
        %1289 = vmatpush1.bf16.msra.mxu0 0
        %1290 = vmatprep.subr.bf16.mxu0 0
        %1291 = vmatpush1.bf16.msra.mxu0 0
        %1292 = vmatprep.subr.bf16.mxu0 0
        %1293 = vmatpush1.bf16.msra.mxu0 0
        %1294 = vmatprep.subr.bf16.mxu0 0
        %1295 = vmatpush1.bf16.msra.mxu0 0
        %1296 = vmatprep.subr.bf16.mxu0 0
        %1297 = vmatpush1.bf16.msra.mxu0 0
        %1298 = vmatprep.subr.bf16.mxu0 0
        %1299 = vmatpush1.bf16.msra.mxu0 0
        %1300 = vmatprep.mubr.bf16.mxu0 0
        %1301 = vmatmul.mubr.bf16.gmra.mrb[0].mxu0 %v1216
        %v1302 = vpop.f32.mrb[0].mxu0
        %v1303 = vadd.f32 0.0, %v1302
        %v1304 = vpop.f32.mrb[0].mxu0
        %v1305 = vpop.f32.mrb[0].mxu0
        %v1306 = vpop.f32.mrb[0].mxu0
        %1307 = vdwg.mxu0
        %v1308 = vadd.f32 %v1183, %v1262
        %v1309 = vadd.f32 %v1184, %v1264
        %v1310 = vadd.f32 %v1185, %v1303
        %v1311 = vld [vmem:[%s216] sm:$0xff]
        %1313 = vset.pattern.permute.xlu0 0
        %1314 = vperm.xlu0 %1313, %v1311
        %v1315 = vpop.permute.xlu0 %1314
        %v1317 = vadd.f32 %v1308, %v1315
        %v1318 = vadd.f32 %v1309, %v1315
        %v1319 = vadd.f32 %v1310, %v1315
        %v1320 = vmax.f32 %v1317, 0.0
        %v1321 = vmax.f32 %v1318, 0.0
        %v1322 = vmax.f32 %v1319, 0.0
        %1323 = vst [vmem:[%s203] sm:$0xff] %v1320
        %1324 = vst [vmem:[%s203 + $0x8] sm:$0xff] %v1321
        %vm1325 = vcmask 261120
        %1326 = vst.msk [vmem:[%s203 + $0x10] sm:$0xff] %vm1325, %v1322
        %s1327 = sand.u32 %s117, 1
        %s1328 = scalar_lea.sflag [#allocation3], %s1327
        %s1329 = sand.u32 %s117, 1
        %s1330 = smul.addr %s1329, 24
        %s1331 = scalar_lea.vmem [#allocation2], %s1330
        // Predicated region
        $region33: #{tpu_custom_call.1} parent=31 // pred_check
          %p1332 = pneg %p127
        $region34: #{tpu_custom_call.1} parent=31 // pred_check_branch
          %1334 = sbr.rel (%p1332) target = $region36
        $region35: #{tpu_custom_call.1} parent=31 // pred_region
          %s1336 = ssub.s32 384, 384
          %1337 = vsyncadd %s1328, %s1336
          %s1338 = smul.addr %s22, 3
          %s1339 = smul.addr %s21, 3
          %s1340 = sadd.s32 %s1338, %s1339
          %s1341 = smul.addr %s1340, 128
          %s1342 = scalar_lea.hbm %s3, %s1341
          %s1344 = sshll.u32 %s1331, 4
          %s1345 = int_to_ptr.vmem [resolvable:$true] %s1344
          %1347 = dma.vmem_to_hbm [thread:$0]  %s1345, 384, %s1342, %s1328
        $region36: #{tpu_custom_call.1} parent=31 // pred_fallthru
          _
      $region32: #{tpu_custom_call.1} parent=5 // pred_fallthru
        _
      %p1348 = scmp.le.s32.totalorder 2, %s12
      // Predicated region
      $region37: #{tpu_custom_call.1} parent=5 // pred_check
        %p1349 = pneg %p1348
      $region38: #{tpu_custom_call.1} parent=5 // pred_check_branch
        %1351 = sbr.rel (%p1349) target = $region40
      $region39: #{tpu_custom_call.1} parent=5 // pred_region
        %s1352 = ssub.s32 %s12, 2
        // Predicated region
        $region41: #{tpu_custom_call.1} parent=39 // pred_check
          %p1353 = pneg %p133
        $region42: #{tpu_custom_call.1} parent=39 // pred_check_branch
          %1355 = sbr.rel (%p1353) target = $region44
        $region43: #{tpu_custom_call.1} parent=39 // pred_region
          %s1356 = sand.u32 %s118, 1
          %s1357 = scalar_lea.sflag [#allocation3], %s1356
          %s1358 = sand.u32 %s118, 1
          %s1359 = smul.addr %s1358, 24
          %s1360 = scalar_lea.vmem [#allocation2], %s1359
          %1361 = dma.done %s1357, 384
        $region44: #{tpu_custom_call.1} parent=39 // pred_fallthru
          _
      $region40: #{tpu_custom_call.1} parent=5 // pred_fallthru
        _
    $region6: #{tpu_custom_call.1} parent=1 // loop_footer
      %s16 = sadd.s32 1, %s12
    $region7: #{tpu_custom_call.1} parent=1 // loop_footer_branch
      %11 = sbr.rel target = $region3
    $region8: #{tpu_custom_call.1} parent=1 // loop_exit
      _
    %1362 = vsyncpa [#allocation3], 1
    %s1363 = scalar_lea.sflag [#allocation3], 1
    %1364 = vsyncpa %s1363, 1

</llo_original>
